<compile_context>
chip_gen: v7x
topology: tpu7x:2x2x1
jax: 0.10.0
libtpu: 0.0.40
codegen_flags: <defaults>
</compile_context>

<pallas_src>
import functools

import jax
import jax.numpy as jnp
from jax.experimental import pallas as pl
from jax.experimental.pallas import tpu as pltpu

KSIZE = 3    # kernel_size=3 in DogTCNModel
PAD = 128    # lane-dense channel padding


def _round_up(n, m):
    return ((n + m - 1) // m) * m


# ----------------------------------------------------------------------------
# Fused kernel: whole DogTCNModel forward for one batch block of BT samples.
# ----------------------------------------------------------------------------
def _fused_kernel(x_ref, meta_ref, w_ref, b_ref, o_ref, *,
                  T, BT, blocks_cfg, head_cfg):
    M = BT * T
    act = x_ref[...].astype(jnp.float32)          # (M, PAD), padded lanes == 0
    bias_all = b_ref[...]                          # (NB, PAD) f32, loaded once

    # Row index within each length-T segment (for per-sample causal masking).
    r = jax.lax.broadcasted_iota(jnp.int32, (M, 1), 0)
    if T > 0 and (T & (T - 1)) == 0:
        t_in_seq = r & (T - 1)
    else:
        t_in_seq = jax.lax.rem(r, jnp.int32(T))

    keep_masks = {}      # shift -> (M, 1) bool, built once, reused everywhere

    def bias_row(idx):
        return bias_all[idx:idx + 1, :]            # (1, PAD) f32

    def shift_tap(a, s):
        """Causal right-shift by s rows within every length-T segment."""
        if s == 0:
            return a
        if s >= T:
            return jnp.zeros_like(a)
        rolled = pltpu.roll(a, shift=s, axis=0)    # XLU sublane rotate (flat)
        keep = keep_masks.get(s)
        if keep is None:
            keep = t_in_seq >= s
            keep_masks[s] = keep
        return jnp.where(keep, rolled, 0.0)        # zero rows that wrapped

    def conv(a, c, dilation):
        """Dilated causal conv, fused bias.  a: (M, PAD) f32 with zero pad."""
        taps = [shift_tap(a, (KSIZE - 1 - k) * dilation) for k in range(KSIZE)]
        if c["dense"]:
            # Pack tap k into lanes [k*cin, (k+1)*cin) via lane rolls; the
            # wrapped lanes are exactly zero by the padded-lane invariant.
            cin = c["cin"]
            xcat = taps[0]
            for k in range(1, KSIZE):
                xcat = xcat + pltpu.roll(taps[k], shift=k * cin, axis=1)
            w = w_ref[pl.ds(c["off"], PAD), :]                  # (128, 128)
            acc = jnp.dot(xcat.astype(jnp.bfloat16), w,
                          preferred_element_type=jnp.float32)
        else:
            # Fallback (3*cin > 128): KSIZE accumulating 128-contraction dots.
            acc = None
            for k in range(KSIZE):
                wk = w_ref[pl.ds(c["off"] + k * PAD, PAD), :]   # (128, 128)
                d = jnp.dot(taps[k].astype(jnp.bfloat16), wk,
                            preferred_element_type=jnp.float32)
                acc = d if acc is None else acc + d
        return acc + bias_row(c["bidx"])

    # ---- TCN: stacked TemporalBlocks (conv->relu, conv->relu, +res, relu) ---
    for blk in blocks_cfg:
        d = blk["dil"]
        h1 = jnp.maximum(conv(act, blk["c1"], d), 0.0)
        h2 = jnp.maximum(conv(h1, blk["c2"], d), 0.0)
        if blk["down"] is not None:      # 1x1 downsample conv (Cin != Cout)
            wd = w_ref[pl.ds(blk["down"]["off"], PAD), :]
            res = jnp.dot(act.astype(jnp.bfloat16), wd,
                          preferred_element_type=jnp.float32) \
                + bias_row(blk["down"]["bidx"])
        else:                            # identity residual (exact)
            res = act
        act = jnp.maximum(h2 + res, 0.0)

    # ---- Head: AdaptiveAvgPool1d(1) + meta_fc + fused final MLP -------------
    ts_parts = [jnp.mean(act[b * T:(b + 1) * T, :], axis=0, keepdims=True)
                for b in range(BT)]
    ts = ts_parts[0] if BT == 1 else jnp.concatenate(ts_parts, axis=0)  # (BT, PAD)

    wm = w_ref[pl.ds(head_cfg["wm_off"], PAD), :]
    static = jnp.maximum(
        jnp.dot(meta_ref[...], wm, preferred_element_type=jnp.float32)
        + bias_row(head_cfg["bm"]), 0.0)                                # (BT, PAD)

    # concat at a 128-lane boundary (tile aligned), single stacked-weight dot.
    fused = jnp.concatenate([ts, static], axis=-1).astype(jnp.bfloat16)  # (BT, 2*PAD)
    wf1 = w_ref[pl.ds(head_cfg["wf1_off"], 2 * PAD), :]
    h = jnp.maximum(
        jnp.dot(fused, wf1, preferred_element_type=jnp.float32)
        + bias_row(head_cfg["bf1"]), 0.0)

    wf2 = w_ref[pl.ds(head_cfg["wf2_off"], PAD), :]
    o_ref[...] = jnp.dot(h.astype(jnp.bfloat16), wf2,
                         preferred_element_type=jnp.float32) \
        + bias_row(head_cfg["bf2"])


def _pick_bt(B, T):
    """Batch-block size: target ~512 MXU rows per grid step, keep blocks legal."""
    target = max(1, 512 // max(T, 1))
    if B <= target:
        return B                       # whole batch in one step (block == full)
    for bt in range(min(B - 1, target), 0, -1):
        if B % bt == 0 and bt % 8 == 0:   # 8-sublane-aligned partial blocks
            return bt
    return B                           # fallback: whole batch, grid=(1,)


def _fused_call(params, cfg, x_flat, meta, B, T):
    """x_flat: (B*T, PAD) bf16; meta: (B, PAD) bf16 -> (B, PAD) f32 logits."""
    BT = _pick_bt(B, T)
    grid = (B // BT,)
    wmat, bias = params["wmat"], params["bias"]
    WR, NB = wmat.shape[0], bias.shape[0]

    kernel = functools.partial(_fused_kernel, T=T, BT=BT,
                               blocks_cfg=cfg["blocks"], head_cfg=cfg["head"])
    return pl.pallas_call(
        kernel,
        out_shape=jax.ShapeDtypeStruct((B, PAD), jnp.float32),
        grid=grid,
        in_specs=[
            pl.BlockSpec((BT * T, PAD), lambda b: (b, 0)),   # activations
            pl.BlockSpec((BT, PAD), lambda b: (b, 0)),       # meta features
            pl.BlockSpec((WR, PAD), lambda b: (0, 0)),       # weight slab (resident)
            pl.BlockSpec((NB, PAD), lambda b: (0, 0)),       # bias slab (resident)
        ],
        out_specs=pl.BlockSpec((BT, PAD), lambda b: (b, 0)),
        compiler_params=pltpu.CompilerParams(
            dimension_semantics=("parallel",)),
    )(x_flat, meta, wmat, bias)


# ----------------------------------------------------------------------------
# Parameters: synthetic deterministic init, pre-packed into two slabs.
# ----------------------------------------------------------------------------
def init_params(key, n_breeds, n_classes, tcn_channels, breed_emb, num_inputs=6):
    assert max(tcn_channels) <= PAD and n_classes <= PAD
    assert breed_emb + 2 <= PAD and num_inputs <= PAD
    keys = iter(jax.random.split(key, 128))

    def rnd(shape, scale=0.1):
        return scale * jax.random.normal(next(keys), shape, jnp.float32)

    w_rows, b_rows = [], []
    row_off = [0]

    def add_w(mat):                                   # mat: (rows, PAD) f32
        off = row_off[0]
        w_rows.append(mat)
        row_off[0] += mat.shape[0]
        return off

    def add_b(vec, cout):                             # vec: (cout,) f32
        b_rows.append(jnp.pad(vec.reshape(1, -1), ((0, 0), (0, PAD - cout))))
        return len(b_rows) - 1

    blocks_cfg = []
    in_ch = num_inputs
    for i, out_ch in enumerate(tcn_channels):
        blk = {"dil": 2 ** i}
        for name, cin in (("c1", in_ch), ("c2", out_ch)):
            w = rnd((KSIZE, cin, out_ch))
            dense = (KSIZE * cin) <= PAD
            if dense:
                kp = _round_up(KSIZE * cin, PAD)                  # == 128
                wpad = jnp.zeros((kp, PAD), jnp.float32)
                wpad = wpad.at[:KSIZE * cin, :out_ch].set(
                    w.reshape(KSIZE * cin, out_ch))               # row = k*cin + c
            else:
                kp = KSIZE * PAD
                wpad = jnp.zeros((kp, PAD), jnp.float32)
                for k in range(KSIZE):
                    wpad = wpad.at[k * PAD:k * PAD + cin, :out_ch].set(w[k])
            blk[name] = {"off": add_w(wpad), "kp": kp, "cin": cin,
                         "dense": dense, "bidx": add_b(rnd((out_ch,)), out_ch)}
        if in_ch != out_ch:   # PyTorch TemporalBlock adds a 1x1 downsample conv
            wd = jnp.zeros((PAD, PAD), jnp.float32).at[:in_ch, :out_ch].set(
                rnd((in_ch, out_ch)))
            blk["down"] = {"off": add_w(wd), "bidx": add_b(rnd((out_ch,)), out_ch)}
        else:
            blk["down"] = None
        blocks_cfg.append(blk)
        in_ch = out_ch

    c_last = tcn_channels[-1]
    meta_in = breed_emb + 2
    wm = jnp.zeros((PAD, PAD), jnp.float32).at[:meta_in, :32].set(rnd((meta_in, 32)))
    wm_off = add_w(wm)
    bm = add_b(rnd((32,)), 32)
    # fused final-layer weight: rows [0:PAD] = ts branch, rows [PAD:PAD+32] = static.
    wf1 = jnp.zeros((2 * PAD, PAD), jnp.float32)
    wf1 = wf1.at[:c_last, :64].set(rnd((c_last, 64)))
    wf1 = wf1.at[PAD:PAD + 32, :64].set(rnd((32, 64)))
    wf1_off = add_w(wf1)
    bf1 = add_b(rnd((64,)), 64)
    wf2 = jnp.zeros((PAD, PAD), jnp.float32).at[:64, :n_classes].set(
        rnd((64, n_classes)))
    wf2_off = add_w(wf2)
    bf2 = add_b(rnd((n_classes,)), n_classes)

    params = {
        "emb": rnd((n_breeds, breed_emb), 1.0),
        "wmat": jnp.concatenate(w_rows, axis=0).astype(jnp.bfloat16),
        "bias": jnp.concatenate(b_rows, axis=0).astype(jnp.float32),
    }
    cfg = {"blocks": blocks_cfg,
           "head": {"wm_off": wm_off, "bm": bm, "wf1_off": wf1_off, "bf1": bf1,
                    "wf2_off": wf2_off, "bf2": bf2}}
    return params, cfg


# ----------------------------------------------------------------------------
# Forward wrapper (plain-JAX glue: transpose/pad, embedding lookup, concat).
# ----------------------------------------------------------------------------
def dog_tcn_forward(params, cfg, seq, breed, sex, age):
    """seq: (B, 6, T) f32 (PyTorch NCW); breed int (B,); sex, age (B,).

    Returns lane-padded logits (B, PAD); slice [:, :n_classes] outside.
    """
    B, c_in, T = seq.shape
    x = jnp.transpose(seq, (0, 2, 1)).astype(jnp.float32)            # (B, T, 6)
    x = jnp.pad(x, ((0, 0), (0, 0), (0, PAD - c_in)))
    x_flat = x.reshape(B * T, PAD).astype(jnp.bfloat16)
    # TODO(synk): nn.Embedding gather + meta concat is glue kept in plain JAX.
    breed_vec = jnp.take(params["emb"], breed, axis=0)
    meta = jnp.concatenate(
        [breed_vec,
         sex[:, None].astype(jnp.float32),
         age[:, None].astype(jnp.float32)], axis=1)                  # (B, E+2)
    meta = jnp.pad(meta, ((0, 0), (0, PAD - meta.shape[1]))).astype(jnp.bfloat16)
    return _fused_call(params, cfg, x_flat, meta, B, T)              # (B, PAD)


# ----------------------------------------------------------------------------
# Pure-JAX reference (f32 math on the same packed weights) for validation.
# ----------------------------------------------------------------------------
def reference_forward(params, cfg, seq, breed, sex, age):
    wmat = params["wmat"].astype(jnp.float32)
    bias = params["bias"]
    B, c_in, T = seq.shape
    act = jnp.transpose(seq, (0, 2, 1)).astype(jnp.float32)
    act = jnp.pad(act, ((0, 0), (0, 0), (0, PAD - c_in)))            # (B, T, PAD)

    for blk in cfg["blocks"]:
        d = blk["dil"]

        def conv(a, c):
            cin = c["cin"]
            wrows = wmat[c["off"]: c["off"] + c["kp"]]
            out = bias[c["bidx"]][None, None, :]
            for k in range(KSIZE):
                if c["dense"]:
                    wk = jnp.zeros((PAD, PAD), jnp.float32).at[:cin].set(
                        wrows[k * cin:(k + 1) * cin])
                else:
                    wk = wrows[k * PAD:(k + 1) * PAD]
                s = (KSIZE - 1 - k) * d
                xk = a if s == 0 else jnp.pad(a, ((0, 0), (s, 0), (0, 0)))[:, :T, :]
                out = out + jnp.einsum("btc,cd->btd", xk, wk)
            return out

        h1 = jnp.maximum(conv(act, blk["c1"]), 0.0)
        h2 = jnp.maximum(conv(h1, blk["c2"]), 0.0)
        if blk["down"] is not None:
            wd = wmat[blk["down"]["off"]: blk["down"]["off"] + PAD]
            res = jnp.einsum("btc,cd->btd", act, wd) + bias[blk["down"]["bidx"]][None, None, :]
        else:
            res = act
        act = jnp.maximum(h2 + res, 0.0)

    ts = jnp.mean(act, axis=1)                                        # (B, PAD)
    breed_vec = jnp.take(params["emb"], breed, axis=0)
    meta = jnp.concatenate(
        [breed_vec, sex[:, None].astype(jnp.float32),
         age[:, None].astype(jnp.float32)], axis=1)
    meta = jnp.pad(meta, ((0, 0), (0, PAD - meta.shape[1])))
    h = cfg["head"]
    wm = wmat[h["wm_off"]: h["wm_off"] + PAD]
    static = jnp.maximum(meta @ wm + bias[h["bm"]], 0.0)
    wf1 = wmat[h["wf1_off"]: h["wf1_off"] + 2 * PAD]
    fused = jnp.concatenate([ts, static], axis=-1)
    hh = jnp.maximum(fused @ wf1 + bias[h["bf1"]], 0.0)
    wf2 = wmat[h["wf2_off"]: h["wf2_off"] + PAD]
    return hh @ wf2 + bias[h["bf2"]]


if __name__ == "__main__":
    B, T = 2, 16
    n_breeds, n_classes = 8, 5
    tcn_channels = (32, 32, 32, 32)   # small stand-in for the default (64,)*4
    breed_emb = 16

    key = jax.random.PRNGKey(0)
    kparam, ks, kb, ksx, ka = jax.random.split(key, 5)
    params, cfg = init_params(kparam, n_breeds, n_classes, tcn_channels, breed_emb)

    seq = jax.random.normal(ks, (B, 6, T), jnp.float32)
    breed = jax.random.randint(kb, (B,), 0, n_breeds)
    sex = jax.random.randint(ksx, (B,), 0, 2).astype(jnp.float32)
    age = jax.random.uniform(ka, (B,), jnp.float32, 0.0, 15.0)

    fwd = jax.jit(lambda p, s, b, sx, a: dog_tcn_forward(p, cfg, s, b, sx, a))
    out_pad = fwd(params, seq, breed, sex, age)
    jax.block_until_ready(out_pad)
    out = out_pad[:, :n_classes]

    ref = reference_forward(params, cfg, seq, breed, sex, age)[:, :n_classes]
    assert out.shape == (B, n_classes) and out.dtype == jnp.float32
    assert bool(jnp.all(jnp.isfinite(out)))
    assert bool(jnp.allclose(out, ref, atol=5e-2, rtol=5e-2))
    print("KERNEL_OK")
</pallas_src>

<mosaic_0001>
module attributes {stable_mosaic.version = 11 : i64} {
  func.func @_fused_kernel(%arg0: i32, %arg1: memref<32x128xbf16, #tpu.memory_space<vmem>>, %arg2: memref<2x128xbf16, #tpu.memory_space<vmem>>, %arg3: memref<1664x128xbf16, #tpu.memory_space<vmem>>, %arg4: memref<12x128xf32, #tpu.memory_space<vmem>>, %arg5: memref<2x128xf32, #tpu.memory_space<vmem>>) attributes {dimension_semantics = [#tpu.dimension_semantics<parallel>], iteration_bounds = array<i64: 1>, scalar_prefetch = 0 : i64, scratch_operands = 0 : i64, tpu.core_type = #tpu.core_type<tc>, window_params = [{transform_indices = @transform_0, window_bounds = array<i64: 32, 128>}, {transform_indices = @transform_1, window_bounds = array<i64: 2, 128>}, {pipeline_mode = #tpu.pipeline_mode<synchronous>, transform_indices = @transform_2, window_bounds = array<i64: 1664, 128>}, {pipeline_mode = #tpu.pipeline_mode<synchronous>, transform_indices = @transform_3, window_bounds = array<i64: 12, 128>}, {transform_indices = @transform_4, window_bounds = array<i64: 2, 128>}]} {
    %c0 = arith.constant 0 : index
    %c0_0 = arith.constant 0 : index
    %0 = vector.load %arg1[%c0, %c0_0] : memref<32x128xbf16, #tpu.memory_space<vmem>>, vector<32x128xbf16>
    %1 = arith.extf %0 : vector<32x128xbf16> to vector<32x128xf32>
    %c0_1 = arith.constant 0 : index
    %c0_2 = arith.constant 0 : index
    %2 = vector.load %arg4[%c0_1, %c0_2] : memref<12x128xf32, #tpu.memory_space<vmem>>, vector<12x128xf32>
    %3 = tpu.iota {dimensions = array<i32: 0>} : vector<32x1xi32>
    %c15_i32 = arith.constant 15 : i32
    %4 = vector.broadcast %c15_i32 : i32 to vector<32x1xi32>
    %5 = arith.andi %3, %4 : vector<32x1xi32>
    %c2_i32 = arith.constant 2 : i32
    %6 = tpu.dynamic_rotate %1 by %c2_i32 dim 0 : vector<32x128xf32>, i32 -> vector<32x128xf32>
    %c2_i32_3 = arith.constant 2 : i32
    %7 = vector.broadcast %c2_i32_3 : i32 to vector<32x1xi32>
    %8 = arith.cmpi sge, %5, %7 : vector<32x1xi32>
    %cst = arith.constant 0.000000e+00 : f32
    %9 = vector.shape_cast %8 : vector<32x1xi1> to vector<32x1xi1>
    %10 = vector.broadcast %9 : vector<32x1xi1> to vector<32x128xi1>
    %11 = vector.broadcast %cst : f32 to vector<32x128xf32>
    %12 = arith.select %10, %6, %11 : vector<32x128xi1>, vector<32x128xf32>
    %c1_i32 = arith.constant 1 : i32
    %13 = tpu.dynamic_rotate %1 by %c1_i32 dim 0 : vector<32x128xf32>, i32 -> vector<32x128xf32>
    %c1_i32_4 = arith.constant 1 : i32
    %14 = vector.broadcast %c1_i32_4 : i32 to vector<32x1xi32>
    %15 = arith.cmpi sge, %5, %14 : vector<32x1xi32>
    %cst_5 = arith.constant 0.000000e+00 : f32
    %16 = vector.shape_cast %15 : vector<32x1xi1> to vector<32x1xi1>
    %17 = vector.broadcast %16 : vector<32x1xi1> to vector<32x128xi1>
    %18 = vector.broadcast %cst_5 : f32 to vector<32x128xf32>
    %19 = arith.select %17, %13, %18 : vector<32x128xi1>, vector<32x128xf32>
    %c6_i32 = arith.constant 6 : i32
    %20 = tpu.dynamic_rotate %19 by %c6_i32 dim 1 : vector<32x128xf32>, i32 -> vector<32x128xf32>
    %21 = arith.addf %12, %20 : vector<32x128xf32>
    %c12_i32 = arith.constant 12 : i32
    %22 = tpu.dynamic_rotate %1 by %c12_i32 dim 1 : vector<32x128xf32>, i32 -> vector<32x128xf32>
    %23 = arith.addf %21, %22 : vector<32x128xf32>
    %c0_6 = arith.constant 0 : index
    %c0_7 = arith.constant 0 : index
    %24 = vector.load %arg3[%c0_6, %c0_7] : memref<1664x128xbf16, #tpu.memory_space<vmem>>, vector<128x128xbf16>
    %25 = arith.truncf %23 : vector<32x128xf32> to vector<32x128xbf16>
    %cst_8 = arith.constant dense<0.000000e+00> : vector<32x128xf32>
    %26 = tpu.matmul %25, %24, %cst_8 {dimension_numbers = #tpu.dot_dimension_numbers<[1], [0], [0], [1], [0, 0, 1, 1], [], []>} : vector<32x128xbf16>, vector<128x128xbf16>, vector<32x128xf32> -> vector<32x128xf32>
    %27 = vector.extract_strided_slice %2 {offsets = [0, 0], sizes = [1, 128], strides = [1, 1]} : vector<12x128xf32> to vector<1x128xf32>
    %28 = vector.broadcast %27 : vector<1x128xf32> to vector<32x128xf32>
    %29 = arith.addf %26, %28 : vector<32x128xf32>
    %cst_9 = arith.constant 0.000000e+00 : f32
    %30 = vector.broadcast %cst_9 : f32 to vector<32x128xf32>
    %31 = arith.maximumf %29, %30 : vector<32x128xf32>
    %c2_i32_10 = arith.constant 2 : i32
    %32 = tpu.dynamic_rotate %31 by %c2_i32_10 dim 0 : vector<32x128xf32>, i32 -> vector<32x128xf32>
    %cst_11 = arith.constant 0.000000e+00 : f32
    %33 = vector.shape_cast %8 : vector<32x1xi1> to vector<32x1xi1>
    %34 = vector.broadcast %33 : vector<32x1xi1> to vector<32x128xi1>
    %35 = vector.broadcast %cst_11 : f32 to vector<32x128xf32>
    %36 = arith.select %34, %32, %35 : vector<32x128xi1>, vector<32x128xf32>
    %c1_i32_12 = arith.constant 1 : i32
    %37 = tpu.dynamic_rotate %31 by %c1_i32_12 dim 0 : vector<32x128xf32>, i32 -> vector<32x128xf32>
    %cst_13 = arith.constant 0.000000e+00 : f32
    %38 = vector.shape_cast %15 : vector<32x1xi1> to vector<32x1xi1>
    %39 = vector.broadcast %38 : vector<32x1xi1> to vector<32x128xi1>
    %40 = vector.broadcast %cst_13 : f32 to vector<32x128xf32>
    %41 = arith.select %39, %37, %40 : vector<32x128xi1>, vector<32x128xf32>
    %c32_i32 = arith.constant 32 : i32
    %42 = tpu.dynamic_rotate %41 by %c32_i32 dim 1 : vector<32x128xf32>, i32 -> vector<32x128xf32>
    %43 = arith.addf %36, %42 : vector<32x128xf32>
    %c64_i32 = arith.constant 64 : i32
    %44 = tpu.dynamic_rotate %31 by %c64_i32 dim 1 : vector<32x128xf32>, i32 -> vector<32x128xf32>
    %45 = arith.addf %43, %44 : vector<32x128xf32>
    %c128 = arith.constant 128 : index
    %c0_14 = arith.constant 0 : index
    %46 = vector.load %arg3[%c128, %c0_14] : memref<1664x128xbf16, #tpu.memory_space<vmem>>, vector<128x128xbf16>
    %47 = arith.truncf %45 : vector<32x128xf32> to vector<32x128xbf16>
    %cst_15 = arith.constant dense<0.000000e+00> : vector<32x128xf32>
    %48 = tpu.matmul %47, %46, %cst_15 {dimension_numbers = #tpu.dot_dimension_numbers<[1], [0], [0], [1], [0, 0, 1, 1], [], []>} : vector<32x128xbf16>, vector<128x128xbf16>, vector<32x128xf32> -> vector<32x128xf32>
    %49 = vector.extract_strided_slice %2 {offsets = [1, 0], sizes = [1, 128], strides = [1, 1]} : vector<12x128xf32> to vector<1x128xf32>
    %50 = vector.broadcast %49 : vector<1x128xf32> to vector<32x128xf32>
    %51 = arith.addf %48, %50 : vector<32x128xf32>
    %cst_16 = arith.constant 0.000000e+00 : f32
    %52 = vector.broadcast %cst_16 : f32 to vector<32x128xf32>
    %53 = arith.maximumf %51, %52 : vector<32x128xf32>
    %c256 = arith.constant 256 : index
    %c0_17 = arith.constant 0 : index
    %54 = vector.load %arg3[%c256, %c0_17] : memref<1664x128xbf16, #tpu.memory_space<vmem>>, vector<128x128xbf16>
    %55 = arith.truncf %1 : vector<32x128xf32> to vector<32x128xbf16>
    %cst_18 = arith.constant dense<0.000000e+00> : vector<32x128xf32>
    %56 = tpu.matmul %55, %54, %cst_18 {dimension_numbers = #tpu.dot_dimension_numbers<[1], [0], [0], [1], [0, 0, 1, 1], [], []>} : vector<32x128xbf16>, vector<128x128xbf16>, vector<32x128xf32> -> vector<32x128xf32>
    %57 = vector.extract_strided_slice %2 {offsets = [2, 0], sizes = [1, 128], strides = [1, 1]} : vector<12x128xf32> to vector<1x128xf32>
    %58 = vector.broadcast %57 : vector<1x128xf32> to vector<32x128xf32>
    %59 = arith.addf %56, %58 : vector<32x128xf32>
    %60 = arith.addf %53, %59 : vector<32x128xf32>
    %cst_19 = arith.constant 0.000000e+00 : f32
    %61 = vector.broadcast %cst_19 : f32 to vector<32x128xf32>
    %62 = arith.maximumf %60, %61 : vector<32x128xf32>
    %c4_i32 = arith.constant 4 : i32
    %63 = tpu.dynamic_rotate %62 by %c4_i32 dim 0 : vector<32x128xf32>, i32 -> vector<32x128xf32>
    %c4_i32_20 = arith.constant 4 : i32
    %64 = vector.broadcast %c4_i32_20 : i32 to vector<32x1xi32>
    %65 = arith.cmpi sge, %5, %64 : vector<32x1xi32>
    %cst_21 = arith.constant 0.000000e+00 : f32
    %66 = vector.shape_cast %65 : vector<32x1xi1> to vector<32x1xi1>
    %67 = vector.broadcast %66 : vector<32x1xi1> to vector<32x128xi1>
    %68 = vector.broadcast %cst_21 : f32 to vector<32x128xf32>
    %69 = arith.select %67, %63, %68 : vector<32x128xi1>, vector<32x128xf32>
    %c2_i32_22 = arith.constant 2 : i32
    %70 = tpu.dynamic_rotate %62 by %c2_i32_22 dim 0 : vector<32x128xf32>, i32 -> vector<32x128xf32>
    %cst_23 = arith.constant 0.000000e+00 : f32
    %71 = vector.shape_cast %8 : vector<32x1xi1> to vector<32x1xi1>
    %72 = vector.broadcast %71 : vector<32x1xi1> to vector<32x128xi1>
    %73 = vector.broadcast %cst_23 : f32 to vector<32x128xf32>
    %74 = arith.select %72, %70, %73 : vector<32x128xi1>, vector<32x128xf32>
    %c32_i32_24 = arith.constant 32 : i32
    %75 = tpu.dynamic_rotate %74 by %c32_i32_24 dim 1 : vector<32x128xf32>, i32 -> vector<32x128xf32>
    %76 = arith.addf %69, %75 : vector<32x128xf32>
    %c64_i32_25 = arith.constant 64 : i32
    %77 = tpu.dynamic_rotate %62 by %c64_i32_25 dim 1 : vector<32x128xf32>, i32 -> vector<32x128xf32>
    %78 = arith.addf %76, %77 : vector<32x128xf32>
    %c384 = arith.constant 384 : index
    %c0_26 = arith.constant 0 : index
    %79 = vector.load %arg3[%c384, %c0_26] : memref<1664x128xbf16, #tpu.memory_space<vmem>>, vector<128x128xbf16>
    %80 = arith.truncf %78 : vector<32x128xf32> to vector<32x128xbf16>
    %cst_27 = arith.constant dense<0.000000e+00> : vector<32x128xf32>
    %81 = tpu.matmul %80, %79, %cst_27 {dimension_numbers = #tpu.dot_dimension_numbers<[1], [0], [0], [1], [0, 0, 1, 1], [], []>} : vector<32x128xbf16>, vector<128x128xbf16>, vector<32x128xf32> -> vector<32x128xf32>
    %82 = vector.extract_strided_slice %2 {offsets = [3, 0], sizes = [1, 128], strides = [1, 1]} : vector<12x128xf32> to vector<1x128xf32>
    %83 = vector.broadcast %82 : vector<1x128xf32> to vector<32x128xf32>
    %84 = arith.addf %81, %83 : vector<32x128xf32>
    %cst_28 = arith.constant 0.000000e+00 : f32
    %85 = vector.broadcast %cst_28 : f32 to vector<32x128xf32>
    %86 = arith.maximumf %84, %85 : vector<32x128xf32>
    %c4_i32_29 = arith.constant 4 : i32
    %87 = tpu.dynamic_rotate %86 by %c4_i32_29 dim 0 : vector<32x128xf32>, i32 -> vector<32x128xf32>
    %cst_30 = arith.constant 0.000000e+00 : f32
    %88 = vector.shape_cast %65 : vector<32x1xi1> to vector<32x1xi1>
    %89 = vector.broadcast %88 : vector<32x1xi1> to vector<32x128xi1>
    %90 = vector.broadcast %cst_30 : f32 to vector<32x128xf32>
    %91 = arith.select %89, %87, %90 : vector<32x128xi1>, vector<32x128xf32>
    %c2_i32_31 = arith.constant 2 : i32
    %92 = tpu.dynamic_rotate %86 by %c2_i32_31 dim 0 : vector<32x128xf32>, i32 -> vector<32x128xf32>
    %cst_32 = arith.constant 0.000000e+00 : f32
    %93 = vector.shape_cast %8 : vector<32x1xi1> to vector<32x1xi1>
    %94 = vector.broadcast %93 : vector<32x1xi1> to vector<32x128xi1>
    %95 = vector.broadcast %cst_32 : f32 to vector<32x128xf32>
    %96 = arith.select %94, %92, %95 : vector<32x128xi1>, vector<32x128xf32>
    %c32_i32_33 = arith.constant 32 : i32
    %97 = tpu.dynamic_rotate %96 by %c32_i32_33 dim 1 : vector<32x128xf32>, i32 -> vector<32x128xf32>
    %98 = arith.addf %91, %97 : vector<32x128xf32>
    %c64_i32_34 = arith.constant 64 : i32
    %99 = tpu.dynamic_rotate %86 by %c64_i32_34 dim 1 : vector<32x128xf32>, i32 -> vector<32x128xf32>
    %100 = arith.addf %98, %99 : vector<32x128xf32>
    %c512 = arith.constant 512 : index
    %c0_35 = arith.constant 0 : index
    %101 = vector.load %arg3[%c512, %c0_35] : memref<1664x128xbf16, #tpu.memory_space<vmem>>, vector<128x128xbf16>
    %102 = arith.truncf %100 : vector<32x128xf32> to vector<32x128xbf16>
    %cst_36 = arith.constant dense<0.000000e+00> : vector<32x128xf32>
    %103 = tpu.matmul %102, %101, %cst_36 {dimension_numbers = #tpu.dot_dimension_numbers<[1], [0], [0], [1], [0, 0, 1, 1], [], []>} : vector<32x128xbf16>, vector<128x128xbf16>, vector<32x128xf32> -> vector<32x128xf32>
    %104 = vector.extract_strided_slice %2 {offsets = [4, 0], sizes = [1, 128], strides = [1, 1]} : vector<12x128xf32> to vector<1x128xf32>
    %105 = vector.broadcast %104 : vector<1x128xf32> to vector<32x128xf32>
    %106 = arith.addf %103, %105 : vector<32x128xf32>
    %cst_37 = arith.constant 0.000000e+00 : f32
    %107 = vector.broadcast %cst_37 : f32 to vector<32x128xf32>
    %108 = arith.maximumf %106, %107 : vector<32x128xf32>
    %109 = arith.addf %108, %62 : vector<32x128xf32>
    %cst_38 = arith.constant 0.000000e+00 : f32
    %110 = vector.broadcast %cst_38 : f32 to vector<32x128xf32>
    %111 = arith.maximumf %109, %110 : vector<32x128xf32>
    %c8_i32 = arith.constant 8 : i32
    %112 = tpu.dynamic_rotate %111 by %c8_i32 dim 0 : vector<32x128xf32>, i32 -> vector<32x128xf32>
    %c8_i32_39 = arith.constant 8 : i32
    %113 = vector.broadcast %c8_i32_39 : i32 to vector<32x1xi32>
    %114 = arith.cmpi sge, %5, %113 : vector<32x1xi32>
    %cst_40 = arith.constant 0.000000e+00 : f32
    %115 = vector.shape_cast %114 : vector<32x1xi1> to vector<32x1xi1>
    %116 = vector.broadcast %115 : vector<32x1xi1> to vector<32x128xi1>
    %117 = vector.broadcast %cst_40 : f32 to vector<32x128xf32>
    %118 = arith.select %116, %112, %117 : vector<32x128xi1>, vector<32x128xf32>
    %c4_i32_41 = arith.constant 4 : i32
    %119 = tpu.dynamic_rotate %111 by %c4_i32_41 dim 0 : vector<32x128xf32>, i32 -> vector<32x128xf32>
    %cst_42 = arith.constant 0.000000e+00 : f32
    %120 = vector.shape_cast %65 : vector<32x1xi1> to vector<32x1xi1>
    %121 = vector.broadcast %120 : vector<32x1xi1> to vector<32x128xi1>
    %122 = vector.broadcast %cst_42 : f32 to vector<32x128xf32>
    %123 = arith.select %121, %119, %122 : vector<32x128xi1>, vector<32x128xf32>
    %c32_i32_43 = arith.constant 32 : i32
    %124 = tpu.dynamic_rotate %123 by %c32_i32_43 dim 1 : vector<32x128xf32>, i32 -> vector<32x128xf32>
    %125 = arith.addf %118, %124 : vector<32x128xf32>
    %c64_i32_44 = arith.constant 64 : i32
    %126 = tpu.dynamic_rotate %111 by %c64_i32_44 dim 1 : vector<32x128xf32>, i32 -> vector<32x128xf32>
    %127 = arith.addf %125, %126 : vector<32x128xf32>
    %c640 = arith.constant 640 : index
    %c0_45 = arith.constant 0 : index
    %128 = vector.load %arg3[%c640, %c0_45] : memref<1664x128xbf16, #tpu.memory_space<vmem>>, vector<128x128xbf16>
    %129 = arith.truncf %127 : vector<32x128xf32> to vector<32x128xbf16>
    %cst_46 = arith.constant dense<0.000000e+00> : vector<32x128xf32>
    %130 = tpu.matmul %129, %128, %cst_46 {dimension_numbers = #tpu.dot_dimension_numbers<[1], [0], [0], [1], [0, 0, 1, 1], [], []>} : vector<32x128xbf16>, vector<128x128xbf16>, vector<32x128xf32> -> vector<32x128xf32>
    %131 = vector.extract_strided_slice %2 {offsets = [5, 0], sizes = [1, 128], strides = [1, 1]} : vector<12x128xf32> to vector<1x128xf32>
    %132 = vector.broadcast %131 : vector<1x128xf32> to vector<32x128xf32>
    %133 = arith.addf %130, %132 : vector<32x128xf32>
    %cst_47 = arith.constant 0.000000e+00 : f32
    %134 = vector.broadcast %cst_47 : f32 to vector<32x128xf32>
    %135 = arith.maximumf %133, %134 : vector<32x128xf32>
    %c8_i32_48 = arith.constant 8 : i32
    %136 = tpu.dynamic_rotate %135 by %c8_i32_48 dim 0 : vector<32x128xf32>, i32 -> vector<32x128xf32>
    %cst_49 = arith.constant 0.000000e+00 : f32
    %137 = vector.shape_cast %114 : vector<32x1xi1> to vector<32x1xi1>
    %138 = vector.broadcast %137 : vector<32x1xi1> to vector<32x128xi1>
    %139 = vector.broadcast %cst_49 : f32 to vector<32x128xf32>
    %140 = arith.select %138, %136, %139 : vector<32x128xi1>, vector<32x128xf32>
    %c4_i32_50 = arith.constant 4 : i32
    %141 = tpu.dynamic_rotate %135 by %c4_i32_50 dim 0 : vector<32x128xf32>, i32 -> vector<32x128xf32>
    %cst_51 = arith.constant 0.000000e+00 : f32
    %142 = vector.shape_cast %65 : vector<32x1xi1> to vector<32x1xi1>
    %143 = vector.broadcast %142 : vector<32x1xi1> to vector<32x128xi1>
    %144 = vector.broadcast %cst_51 : f32 to vector<32x128xf32>
    %145 = arith.select %143, %141, %144 : vector<32x128xi1>, vector<32x128xf32>
    %c32_i32_52 = arith.constant 32 : i32
    %146 = tpu.dynamic_rotate %145 by %c32_i32_52 dim 1 : vector<32x128xf32>, i32 -> vector<32x128xf32>
    %147 = arith.addf %140, %146 : vector<32x128xf32>
    %c64_i32_53 = arith.constant 64 : i32
    %148 = tpu.dynamic_rotate %135 by %c64_i32_53 dim 1 : vector<32x128xf32>, i32 -> vector<32x128xf32>
    %149 = arith.addf %147, %148 : vector<32x128xf32>
    %c768 = arith.constant 768 : index
    %c0_54 = arith.constant 0 : index
    %150 = vector.load %arg3[%c768, %c0_54] : memref<1664x128xbf16, #tpu.memory_space<vmem>>, vector<128x128xbf16>
    %151 = arith.truncf %149 : vector<32x128xf32> to vector<32x128xbf16>
    %cst_55 = arith.constant dense<0.000000e+00> : vector<32x128xf32>
    %152 = tpu.matmul %151, %150, %cst_55 {dimension_numbers = #tpu.dot_dimension_numbers<[1], [0], [0], [1], [0, 0, 1, 1], [], []>} : vector<32x128xbf16>, vector<128x128xbf16>, vector<32x128xf32> -> vector<32x128xf32>
    %153 = vector.extract_strided_slice %2 {offsets = [6, 0], sizes = [1, 128], strides = [1, 1]} : vector<12x128xf32> to vector<1x128xf32>
    %154 = vector.broadcast %153 : vector<1x128xf32> to vector<32x128xf32>
    %155 = arith.addf %152, %154 : vector<32x128xf32>
    %cst_56 = arith.constant 0.000000e+00 : f32
    %156 = vector.broadcast %cst_56 : f32 to vector<32x128xf32>
    %157 = arith.maximumf %155, %156 : vector<32x128xf32>
    %158 = arith.addf %157, %111 : vector<32x128xf32>
    %cst_57 = arith.constant 0.000000e+00 : f32
    %159 = vector.broadcast %cst_57 : f32 to vector<32x128xf32>
    %160 = arith.maximumf %158, %159 : vector<32x128xf32>
    %cst_58 = arith.constant 0.000000e+00 : f32
    %161 = vector.broadcast %cst_58 : f32 to vector<32x128xf32>
    %c8_i32_59 = arith.constant 8 : i32
    %162 = tpu.dynamic_rotate %160 by %c8_i32_59 dim 0 : vector<32x128xf32>, i32 -> vector<32x128xf32>
    %cst_60 = arith.constant 0.000000e+00 : f32
    %163 = vector.shape_cast %114 : vector<32x1xi1> to vector<32x1xi1>
    %164 = vector.broadcast %163 : vector<32x1xi1> to vector<32x128xi1>
    %165 = vector.broadcast %cst_60 : f32 to vector<32x128xf32>
    %166 = arith.select %164, %162, %165 : vector<32x128xi1>, vector<32x128xf32>
    %c32_i32_61 = arith.constant 32 : i32
    %167 = tpu.dynamic_rotate %166 by %c32_i32_61 dim 1 : vector<32x128xf32>, i32 -> vector<32x128xf32>
    %168 = arith.addf %161, %167 : vector<32x128xf32>
    %c64_i32_62 = arith.constant 64 : i32
    %169 = tpu.dynamic_rotate %160 by %c64_i32_62 dim 1 : vector<32x128xf32>, i32 -> vector<32x128xf32>
    %170 = arith.addf %168, %169 : vector<32x128xf32>
    %c896 = arith.constant 896 : index
    %c0_63 = arith.constant 0 : index
    %171 = vector.load %arg3[%c896, %c0_63] : memref<1664x128xbf16, #tpu.memory_space<vmem>>, vector<128x128xbf16>
    %172 = arith.truncf %170 : vector<32x128xf32> to vector<32x128xbf16>
    %cst_64 = arith.constant dense<0.000000e+00> : vector<32x128xf32>
    %173 = tpu.matmul %172, %171, %cst_64 {dimension_numbers = #tpu.dot_dimension_numbers<[1], [0], [0], [1], [0, 0, 1, 1], [], []>} : vector<32x128xbf16>, vector<128x128xbf16>, vector<32x128xf32> -> vector<32x128xf32>
    %174 = vector.extract_strided_slice %2 {offsets = [7, 0], sizes = [1, 128], strides = [1, 1]} : vector<12x128xf32> to vector<1x128xf32>
    %175 = vector.broadcast %174 : vector<1x128xf32> to vector<32x128xf32>
    %176 = arith.addf %173, %175 : vector<32x128xf32>
    %cst_65 = arith.constant 0.000000e+00 : f32
    %177 = vector.broadcast %cst_65 : f32 to vector<32x128xf32>
    %178 = arith.maximumf %176, %177 : vector<32x128xf32>
    %cst_66 = arith.constant 0.000000e+00 : f32
    %179 = vector.broadcast %cst_66 : f32 to vector<32x128xf32>
    %c8_i32_67 = arith.constant 8 : i32
    %180 = tpu.dynamic_rotate %178 by %c8_i32_67 dim 0 : vector<32x128xf32>, i32 -> vector<32x128xf32>
    %cst_68 = arith.constant 0.000000e+00 : f32
    %181 = vector.shape_cast %114 : vector<32x1xi1> to vector<32x1xi1>
    %182 = vector.broadcast %181 : vector<32x1xi1> to vector<32x128xi1>
    %183 = vector.broadcast %cst_68 : f32 to vector<32x128xf32>
    %184 = arith.select %182, %180, %183 : vector<32x128xi1>, vector<32x128xf32>
    %c32_i32_69 = arith.constant 32 : i32
    %185 = tpu.dynamic_rotate %184 by %c32_i32_69 dim 1 : vector<32x128xf32>, i32 -> vector<32x128xf32>
    %186 = arith.addf %179, %185 : vector<32x128xf32>
    %c64_i32_70 = arith.constant 64 : i32
    %187 = tpu.dynamic_rotate %178 by %c64_i32_70 dim 1 : vector<32x128xf32>, i32 -> vector<32x128xf32>
    %188 = arith.addf %186, %187 : vector<32x128xf32>
    %c1024 = arith.constant 1024 : index
    %c0_71 = arith.constant 0 : index
    %189 = vector.load %arg3[%c1024, %c0_71] : memref<1664x128xbf16, #tpu.memory_space<vmem>>, vector<128x128xbf16>
    %190 = arith.truncf %188 : vector<32x128xf32> to vector<32x128xbf16>
    %cst_72 = arith.constant dense<0.000000e+00> : vector<32x128xf32>
    %191 = tpu.matmul %190, %189, %cst_72 {dimension_numbers = #tpu.dot_dimension_numbers<[1], [0], [0], [1], [0, 0, 1, 1], [], []>} : vector<32x128xbf16>, vector<128x128xbf16>, vector<32x128xf32> -> vector<32x128xf32>
    %192 = vector.extract_strided_slice %2 {offsets = [8, 0], sizes = [1, 128], strides = [1, 1]} : vector<12x128xf32> to vector<1x128xf32>
    %193 = vector.broadcast %192 : vector<1x128xf32> to vector<32x128xf32>
    %194 = arith.addf %191, %193 : vector<32x128xf32>
    %cst_73 = arith.constant 0.000000e+00 : f32
    %195 = vector.broadcast %cst_73 : f32 to vector<32x128xf32>
    %196 = arith.maximumf %194, %195 : vector<32x128xf32>
    %197 = arith.addf %196, %160 : vector<32x128xf32>
    %cst_74 = arith.constant 0.000000e+00 : f32
    %198 = vector.broadcast %cst_74 : f32 to vector<32x128xf32>
    %199 = arith.maximumf %197, %198 : vector<32x128xf32>
    %200 = vector.extract_strided_slice %199 {offsets = [0, 0], sizes = [16, 128], strides = [1, 1]} : vector<32x128xf32> to vector<16x128xf32>
    %cst_75 = arith.constant dense<0.000000e+00> : vector<128xf32>
    %201 = vector.multi_reduction <add>, %200, %cst_75 [0] : vector<16x128xf32> to vector<128xf32>
    %202 = vector.shape_cast %201 : vector<128xf32> to vector<1x128xf32>
    %cst_76 = arith.constant 1.600000e+01 : f32
    %203 = vector.broadcast %cst_76 : f32 to vector<1x128xf32>
    %204 = arith.divf %202, %203 : vector<1x128xf32>
    %205 = vector.extract_strided_slice %199 {offsets = [16, 0], sizes = [16, 128], strides = [1, 1]} : vector<32x128xf32> to vector<16x128xf32>
    %cst_77 = arith.constant dense<0.000000e+00> : vector<128xf32>
    %206 = vector.multi_reduction <add>, %205, %cst_77 [0] : vector<16x128xf32> to vector<128xf32>
    %207 = vector.shape_cast %206 : vector<128xf32> to vector<1x128xf32>
    %cst_78 = arith.constant 1.600000e+01 : f32
    %208 = vector.broadcast %cst_78 : f32 to vector<1x128xf32>
    %209 = arith.divf %207, %208 : vector<1x128xf32>
    %210 = tpu.concatenate %204, %209 in 0 : vector<1x128xf32>, vector<1x128xf32> -> vector<2x128xf32>
    %c1152 = arith.constant 1152 : index
    %c0_79 = arith.constant 0 : index
    %211 = vector.load %arg3[%c1152, %c0_79] : memref<1664x128xbf16, #tpu.memory_space<vmem>>, vector<128x128xbf16>
    %c0_80 = arith.constant 0 : index
    %c0_81 = arith.constant 0 : index
    %212 = vector.load %arg2[%c0_80, %c0_81] : memref<2x128xbf16, #tpu.memory_space<vmem>>, vector<2x128xbf16>
    %cst_82 = arith.constant dense<0.000000e+00> : vector<2x128xf32>
    %213 = tpu.matmul %212, %211, %cst_82 {dimension_numbers = #tpu.dot_dimension_numbers<[1], [0], [0], [1], [0, 0, 1, 1], [], []>} : vector<2x128xbf16>, vector<128x128xbf16>, vector<2x128xf32> -> vector<2x128xf32>
    %214 = vector.extract_strided_slice %2 {offsets = [9, 0], sizes = [1, 128], strides = [1, 1]} : vector<12x128xf32> to vector<1x128xf32>
    %215 = vector.broadcast %214 : vector<1x128xf32> to vector<2x128xf32>
    %216 = arith.addf %213, %215 : vector<2x128xf32>
    %cst_83 = arith.constant 0.000000e+00 : f32
    %217 = vector.broadcast %cst_83 : f32 to vector<2x128xf32>
    %218 = arith.maximumf %216, %217 : vector<2x128xf32>
    %219 = tpu.concatenate %210, %218 in 1 : vector<2x128xf32>, vector<2x128xf32> -> vector<2x256xf32>
    %220 = arith.truncf %219 : vector<2x256xf32> to vector<2x256xbf16>
    %c1280 = arith.constant 1280 : index
    %c0_84 = arith.constant 0 : index
    %221 = vector.load %arg3[%c1280, %c0_84] : memref<1664x128xbf16, #tpu.memory_space<vmem>>, vector<256x128xbf16>
    %cst_85 = arith.constant dense<0.000000e+00> : vector<2x128xf32>
    %222 = tpu.matmul %220, %221, %cst_85 {dimension_numbers = #tpu.dot_dimension_numbers<[1], [0], [0], [1], [0, 0, 1, 1], [], []>} : vector<2x256xbf16>, vector<256x128xbf16>, vector<2x128xf32> -> vector<2x128xf32>
    %223 = vector.extract_strided_slice %2 {offsets = [10, 0], sizes = [1, 128], strides = [1, 1]} : vector<12x128xf32> to vector<1x128xf32>
    %224 = vector.broadcast %223 : vector<1x128xf32> to vector<2x128xf32>
    %225 = arith.addf %222, %224 : vector<2x128xf32>
    %cst_86 = arith.constant 0.000000e+00 : f32
    %226 = vector.broadcast %cst_86 : f32 to vector<2x128xf32>
    %227 = arith.maximumf %225, %226 : vector<2x128xf32>
    %c1536 = arith.constant 1536 : index
    %c0_87 = arith.constant 0 : index
    %228 = vector.load %arg3[%c1536, %c0_87] : memref<1664x128xbf16, #tpu.memory_space<vmem>>, vector<128x128xbf16>
    %229 = arith.truncf %227 : vector<2x128xf32> to vector<2x128xbf16>
    %cst_88 = arith.constant dense<0.000000e+00> : vector<2x128xf32>
    %230 = tpu.matmul %229, %228, %cst_88 {dimension_numbers = #tpu.dot_dimension_numbers<[1], [0], [0], [1], [0, 0, 1, 1], [], []>} : vector<2x128xbf16>, vector<128x128xbf16>, vector<2x128xf32> -> vector<2x128xf32>
    %231 = vector.extract_strided_slice %2 {offsets = [11, 0], sizes = [1, 128], strides = [1, 1]} : vector<12x128xf32> to vector<1x128xf32>
    %232 = vector.broadcast %231 : vector<1x128xf32> to vector<2x128xf32>
    %233 = arith.addf %230, %232 : vector<2x128xf32>
    %c0_89 = arith.constant 0 : index
    %c0_90 = arith.constant 0 : index
    %234 = vector.load %arg5[%c0_89, %c0_90] : memref<2x128xf32, #tpu.memory_space<vmem>>, vector<2x128xf32>
    tpu.vector_store %arg5[%c0_89, %c0_90], %233 {strides = array<i32>} : memref<2x128xf32, #tpu.memory_space<vmem>>, vector<2x128xf32>,
    return
  }
  func.func @transform_0(%arg0: i32) -> (i32, i32) {
    %c0_i32 = arith.constant 0 : i32
    %c0_i32_0 = arith.constant 0 : i32
    return %arg0, %c0_i32 : i32, i32
  }
  func.func @transform_1(%arg0: i32) -> (i32, i32) {
    %c0_i32 = arith.constant 0 : i32
    %c0_i32_0 = arith.constant 0 : i32
    return %arg0, %c0_i32 : i32, i32
  }
  func.func @transform_2(%arg0: i32) -> (i32, i32) {
    %c0_i32 = arith.constant 0 : i32
    %c0_i32_0 = arith.constant 0 : i32
    %c0_i32_1 = arith.constant 0 : i32
    return %c0_i32, %c0_i32_0 : i32, i32
  }
  func.func @transform_3(%arg0: i32) -> (i32, i32) {
    %c0_i32 = arith.constant 0 : i32
    %c0_i32_0 = arith.constant 0 : i32
    %c0_i32_1 = arith.constant 0 : i32
    return %c0_i32, %c0_i32_0 : i32, i32
  }
  func.func @transform_4(%arg0: i32) -> (i32, i32) {
    %c0_i32 = arith.constant 0 : i32
    %c0_i32_0 = arith.constant 0 : i32
    return %arg0, %c0_i32 : i32, i32
  }
}

</mosaic_0001>

<llo_original>
// kernel: _lambda_.1
$region0: #{_lambda_.1}
  #allocation0 [shape = 'u32[]', space=smem, size = 0x4, offset = 0x4, fixed_abs, tag = 'smem constant byte address 0x4 - core index']
  #allocation1 [shape = 'u32[144,128]{1,0:T(1,128)}', space=vmem, size = 0x12000, scoped, tag = 'internal scratch']
  %s0 = inlined_call_operand.vmem [shape: bf16[32,128], index: 0, kind: input, shape index: {}]
  %s1 = inlined_call_operand.vmem [shape: bf16[2,128], index: 1, kind: input, shape index: {}]
  %s2 = inlined_call_operand.hbm [shape: bf16[1664,128], index: 2, kind: input, shape index: {}]
  %s3 = inlined_call_operand.vmem [shape: f32[12,128], index: 3, kind: input, shape index: {}]
  %s4 = inlined_call_operand.hbm [shape: f32[2,128], index: 4, kind: output, shape index: {}]
  %s5 = sld [smem:[#allocation0]]
  $region30: #{_lambda_.1} parent=0
    _
  %s7 = ssub.s32 1, %s5
  %s8 = scalar_select 0, %s7, %s5
  $region1: #{_lambda_.1} parent=0
    #allocation2 [shape = 'u8[425984]{0}', space=vmem, size = 0x68000, scoped, tag = 'input window, operand 2, single buffered']
    #allocation3 [shape = 's32[1]{0}', space=sflag, size = 0x4, scoped, tag = 'scoped memory for _lambda_.1']
    #allocation4 [shape = 's32[1]{0}', space=sflag, size = 0x4, scoped, tag = 'scoped memory for _lambda_.1']
    #allocation5 [shape = 'u8[1024]{0}', space=vmem, size = 0x400, scoped, tag = 'output window, operand 0, single buffered']
    %9 = vsyncpa [#allocation3], 0
    %10 = vsyncpa [#allocation4], 0
    // Predicated region
    $region2: #{_lambda_.1} parent=1 // pred_check
      _
    $region3: #{_lambda_.1} parent=1 // pred_check_branch
      %12 = sbr.rel (0) target = $region5
    $region4: #{_lambda_.1} parent=1 // pred_region
      _
    $region5: #{_lambda_.1} parent=1 // pred_fallthru
      _
    // Predicated region
    $region6: #{_lambda_.1} parent=1 // pred_check
      _
    $region7: #{_lambda_.1} parent=1 // pred_check_branch
      %14 = sbr.rel (0) target = $region9
    $region8: #{_lambda_.1} parent=1 // pred_region
      _
    $region9: #{_lambda_.1} parent=1 // pred_fallthru
      _
    // Predicated region
    $region10: #{_lambda_.1} parent=1 // pred_check
      _
    $region11: #{_lambda_.1} parent=1 // pred_check_branch
      %16 = sbr.rel (0) target = $region13
    $region12: #{_lambda_.1} parent=1 // pred_region
      %s18 = ssub.s32 13312, 13312
      %19 = vsyncadd [#allocation3], %s18
      %s20 = sshll.u32 [#allocation2], 4
      %s21 = int_to_ptr.vmem [resolvable:$true] %s20
      %26 = dma.hbm_to_vmem [thread:$0]  %s2, 13312, %s21, [#allocation3], 64, 64, 4
    $region13: #{_lambda_.1} parent=1 // pred_fallthru
      _
    // Predicated region
    $region14: #{_lambda_.1} parent=1 // pred_check
      _
    $region15: #{_lambda_.1} parent=1 // pred_check_branch
      %28 = sbr.rel (0) target = $region17
    $region16: #{_lambda_.1} parent=1 // pred_region
      _
    $region17: #{_lambda_.1} parent=1 // pred_fallthru
      _
    // Predicated region
    $region18: #{_lambda_.1} parent=1 // pred_check
      _
    $region19: #{_lambda_.1} parent=1 // pred_check_branch
      %30 = sbr.rel (0) target = $region21
    $region20: #{_lambda_.1} parent=1 // pred_region
      %31 = dma.done [#allocation3], 13312
    $region21: #{_lambda_.1} parent=1 // pred_fallthru
      _
    %v33 = vld [vmem:[%s0] sm:$0xf]
    %v34 = vld [vmem:[%s0 + $0x4] sm:$0xf]
    %v35 = vld [vmem:[%s0 + $0x8] sm:$0xf]
    %v36 = vld [vmem:[%s0 + $0xc] sm:$0xf]
    %v37 = vunpack.c.l.bf16 %v33
    %v38 = vunpack.c.l.bf16 %v34
    %v39 = vunpack.c.l.bf16 %v35
    %v40 = vunpack.c.l.bf16 %v36
    %v41 = vld [vmem:[%s3] sm:$0xff]
    %v42 = vld [vmem:[%s3 + $0x8] sm:$0xf]
    %v43 = vlaneseq
    %v44 = vshrl.u32 %v43, 7
    %v45 = vadd.s32 %v44, 8
    %v46 = vadd.s32 %v44, 16
    %v47 = vadd.s32 %v44, 24
    %v48 = vand.u32 %v44, 15
    %v49 = vand.u32 %v45, 15
    %v50 = vand.u32 %v46, 15
    %v51 = vand.u32 %v47, 15
    %v52 = vrot.slane %v37, 6
    %v53 = vrot.slane %v38, 6
    %v54 = vrot.slane %v39, 6
    %v55 = vrot.slane %v40, 6
    %vm56 = vcmp.lt.s32.totalorder %v44, 2
    %v57 = vsel %vm56, %v54, %v55
    %v58 = vsel %vm56, %v53, %v54
    %v59 = vsel %vm56, %v52, %v53
    %v60 = vsel %vm56, %v55, %v52
    %vm61 = vcmp.ge.s32.totalorder %v48, 2
    %vm62 = vcmp.ge.s32.totalorder %v49, 2
    %vm63 = vcmp.ge.s32.totalorder %v50, 2
    %vm64 = vcmp.ge.s32.totalorder %v51, 2
    %v65 = vsel %vm61, 1, 0
    %v66 = vsel %vm62, 1, 0
    %v67 = vsel %vm63, 1, 0
    %v68 = vsel %vm64, 1, 0
    %vm69 = vcmp.eq.s32.totalorder %v65, 1
    %vm70 = vcmp.eq.s32.totalorder %v66, 1
    %vm71 = vcmp.eq.s32.totalorder %v67, 1
    %vm72 = vcmp.eq.s32.totalorder %v68, 1
    %v73 = vsel %vm69, %v60, 0.0
    %v74 = vsel %vm70, %v59, 0.0
    %v75 = vsel %vm71, %v58, 0.0
    %v76 = vsel %vm72, %v57, 0.0
    %v77 = vrot.slane %v37, 7
    %v78 = vrot.slane %v38, 7
    %v79 = vrot.slane %v39, 7
    %v80 = vrot.slane %v40, 7
    %vm81 = vcmp.lt.s32.totalorder %v44, 1
    %v82 = vsel %vm81, %v79, %v80
    %v83 = vsel %vm81, %v78, %v79
    %v84 = vsel %vm81, %v77, %v78
    %v85 = vsel %vm81, %v80, %v77
    %vm86 = vcmp.ge.s32.totalorder %v48, 1
    %vm87 = vcmp.ge.s32.totalorder %v49, 1
    %vm88 = vcmp.ge.s32.totalorder %v50, 1
    %vm89 = vcmp.ge.s32.totalorder %v51, 1
    %v90 = vsel %vm86, 1, 0
    %v91 = vsel %vm87, 1, 0
    %v92 = vsel %vm88, 1, 0
    %v93 = vsel %vm89, 1, 0
    %vm94 = vcmp.eq.s32.totalorder %v90, 1
    %vm95 = vcmp.eq.s32.totalorder %v91, 1
    %vm96 = vcmp.eq.s32.totalorder %v92, 1
    %vm97 = vcmp.eq.s32.totalorder %v93, 1
    %v98 = vsel %vm94, %v85, 0.0
    %v99 = vsel %vm95, %v84, 0.0
    %v100 = vsel %vm96, %v83, 0.0
    %v101 = vsel %vm97, %v82, 0.0
    %102 = vrot.lane.b32.xlu0 %v98, 6
    %v103 = vpop.permute.xlu0 %102
    %104 = vrot.lane.b32.xlu0 %v99, 6
    %v105 = vpop.permute.xlu0 %104
    %106 = vrot.lane.b32.xlu0 %v100, 6
    %v107 = vpop.permute.xlu0 %106
    %108 = vrot.lane.b32.xlu0 %v101, 6
    %v109 = vpop.permute.xlu0 %108
    %v110 = vadd.f32 %v73, %v103
    %v111 = vadd.f32 %v74, %v105
    %v112 = vadd.f32 %v75, %v107
    %v113 = vadd.f32 %v76, %v109
    %114 = vrot.lane.b32.xlu0 %v37, 12
    %v115 = vpop.permute.xlu0 %114
    %116 = vrot.lane.b32.xlu0 %v38, 12
    %v117 = vpop.permute.xlu0 %116
    %118 = vrot.lane.b32.xlu0 %v39, 12
    %v119 = vpop.permute.xlu0 %118
    %120 = vrot.lane.b32.xlu0 %v40, 12
    %v121 = vpop.permute.xlu0 %120
    %v122 = vadd.f32 %v110, %v115
    %v123 = vadd.f32 %v111, %v117
    %v124 = vadd.f32 %v112, %v119
    %v125 = vadd.f32 %v113, %v121
    %v126 = vld [vmem:[#allocation2] sm:$0xf]
    %v127 = vld [vmem:[#allocation2 + $0x4] sm:$0xf]
    %v128 = vld [vmem:[#allocation2 + $0x8] sm:$0xf]
    %v129 = vld [vmem:[#allocation2 + $0xc] sm:$0xf]
    %v130 = vld [vmem:[#allocation2 + $0x10] sm:$0xf]
    %v131 = vld [vmem:[#allocation2 + $0x14] sm:$0xf]
    %v132 = vld [vmem:[#allocation2 + $0x18] sm:$0xf]
    %v133 = vld [vmem:[#allocation2 + $0x1c] sm:$0xf]
    %v134 = vld [vmem:[#allocation2 + $0x20] sm:$0xf]
    %v135 = vld [vmem:[#allocation2 + $0x24] sm:$0xf]
    %v136 = vld [vmem:[#allocation2 + $0x28] sm:$0xf]
    %v137 = vld [vmem:[#allocation2 + $0x2c] sm:$0xf]
    %v138 = vld [vmem:[#allocation2 + $0x30] sm:$0xf]
    %v139 = vld [vmem:[#allocation2 + $0x34] sm:$0xf]
    %v140 = vld [vmem:[#allocation2 + $0x38] sm:$0xf]
    %v141 = vld [vmem:[#allocation2 + $0x3c] sm:$0xf]
    %v142 = vpack.c.bf16 %v123, %v122
    %v143 = vpack.c.bf16 %v125, %v124
    %v144 = vlaneseq
    %v145 = vshrl.u32 %v144, 7
    %v146 = vsub.s32 0, %v145
    %v147 = vrot.slane %v41, %v146
    %v164 = vunpack.c.l.b16 %v126
    %v165 = vunpack.c.l.b16 %v127
    %v166 = vunpack.c.l.b16 %v128
    %v167 = vunpack.c.l.b16 %v129
    %v168 = vunpack.c.l.b16 %v130
    %v169 = vunpack.c.l.b16 %v131
    %v170 = vunpack.c.l.b16 %v132
    %v171 = vunpack.c.l.b16 %v133
    %v172 = vunpack.c.l.b16 %v134
    %v173 = vunpack.c.l.b16 %v135
    %v174 = vunpack.c.l.b16 %v136
    %v175 = vunpack.c.l.b16 %v137
    %v176 = vunpack.c.l.b16 %v138
    %v177 = vunpack.c.l.b16 %v139
    %v178 = vunpack.c.l.b16 %v140
    %v179 = vunpack.c.l.b16 %v141
    %v180 = vpack.c.b16 %v165, %v164
    %v181 = vpack.c.b16 %v167, %v166
    %v182 = vpack.c.b16 %v169, %v168
    %v183 = vpack.c.b16 %v171, %v170
    %v184 = vpack.c.b16 %v173, %v172
    %v185 = vpack.c.b16 %v175, %v174
    %v186 = vpack.c.b16 %v177, %v176
    %v187 = vpack.c.b16 %v179, %v178
    %196 = vmatprep.subr.bf16.mxu0 0
    %197 = vmatpush1.bf16.msra.mxu0 %v180
    %198 = vmatprep.subr.bf16.mxu0 0
    %199 = vmatpush1.bf16.msra.mxu0 %v181
    %200 = vmatprep.subr.bf16.mxu0 0
    %201 = vmatpush1.bf16.msra.mxu0 %v182
    %202 = vmatprep.subr.bf16.mxu0 0
    %203 = vmatpush1.bf16.msra.mxu0 %v183
    %204 = vmatprep.subr.bf16.mxu0 0
    %205 = vmatpush1.bf16.msra.mxu0 %v184
    %206 = vmatprep.subr.bf16.mxu0 0
    %207 = vmatpush1.bf16.msra.mxu0 %v185
    %208 = vmatprep.subr.bf16.mxu0 0
    %209 = vmatpush1.bf16.msra.mxu0 %v186
    %210 = vmatprep.subr.bf16.mxu0 0
    %211 = vmatpush1.bf16.msra.mxu0 %v187
    %212 = vmatprep.subr.bf16.mxu0 0
    %213 = vmatpush1.bf16.msra.mxu0 0
    %214 = vmatprep.subr.bf16.mxu0 0
    %215 = vmatpush1.bf16.msra.mxu0 0
    %216 = vmatprep.subr.bf16.mxu0 0
    %217 = vmatpush1.bf16.msra.mxu0 0
    %218 = vmatprep.subr.bf16.mxu0 0
    %219 = vmatpush1.bf16.msra.mxu0 0
    %220 = vmatprep.subr.bf16.mxu0 0
    %221 = vmatpush1.bf16.msra.mxu0 0
    %222 = vmatprep.subr.bf16.mxu0 0
    %223 = vmatpush1.bf16.msra.mxu0 0
    %224 = vmatprep.subr.bf16.mxu0 0
    %225 = vmatpush1.bf16.msra.mxu0 0
    %226 = vmatprep.subr.bf16.mxu0 0
    %227 = vmatpush1.bf16.msra.mxu0 0
    %228 = vmatprep.mubr.bf16.mxu0 0
    %229 = vmatmul.mubr.bf16.gmra.mrb[0].mxu0 %v142
    %v230 = vpop.f32.mrb[0].mxu0
    %v231 = vadd.f32 %v147, %v230
    %v232 = vpop.f32.mrb[0].mxu0
    %v233 = vpop.f32.mrb[0].mxu0
    %v234 = vadd.f32 %v147, %v233
    %v235 = vpop.f32.mrb[0].mxu0
    %236 = vmatprep.mubr.bf16.mxu0 0
    %237 = vmatmul.mubr.bf16.gmra.mrb[0].mxu0 %v143
    %v238 = vpop.f32.mrb[0].mxu0
    %v239 = vadd.f32 %v147, %v238
    %v240 = vpop.f32.mrb[0].mxu0
    %v241 = vpop.f32.mrb[0].mxu0
    %v242 = vadd.f32 %v147, %v241
    %v243 = vpop.f32.mrb[0].mxu0
    %244 = vdwg.mxu0
    %v245 = vmax.f32 %v231, 0.0
    %v246 = vmax.f32 %v234, 0.0
    %v247 = vmax.f32 %v239, 0.0
    %v248 = vmax.f32 %v242, 0.0
    %v249 = vrot.slane %v245, 6
    %v250 = vrot.slane %v246, 6
    %v251 = vrot.slane %v247, 6
    %v252 = vrot.slane %v248, 6
    %v253 = vsel %vm56, %v251, %v252
    %v254 = vsel %vm56, %v250, %v251
    %v255 = vsel %vm56, %v249, %v250
    %v256 = vsel %vm56, %v252, %v249
    %v257 = vsel %vm69, %v256, 0.0
    %v258 = vsel %vm70, %v255, 0.0
    %v259 = vsel %vm71, %v254, 0.0
    %v260 = vsel %vm72, %v253, 0.0
    %v261 = vrot.slane %v245, 7
    %v262 = vrot.slane %v246, 7
    %v263 = vrot.slane %v247, 7
    %v264 = vrot.slane %v248, 7
    %v265 = vsel %vm81, %v263, %v264
    %v266 = vsel %vm81, %v262, %v263
    %v267 = vsel %vm81, %v261, %v262
    %v268 = vsel %vm81, %v264, %v261
    %v269 = vsel %vm94, %v268, 0.0
    %v270 = vsel %vm95, %v267, 0.0
    %v271 = vsel %vm96, %v266, 0.0
    %v272 = vsel %vm97, %v265, 0.0
    %273 = vrot.lane.b32.xlu0 %v269, 32
    %v274 = vpop.permute.xlu0 %273
    %275 = vrot.lane.b32.xlu0 %v270, 32
    %v276 = vpop.permute.xlu0 %275
    %277 = vrot.lane.b32.xlu0 %v271, 32
    %v278 = vpop.permute.xlu0 %277
    %279 = vrot.lane.b32.xlu0 %v272, 32
    %v280 = vpop.permute.xlu0 %279
    %v281 = vadd.f32 %v257, %v274
    %v282 = vadd.f32 %v258, %v276
    %v283 = vadd.f32 %v259, %v278
    %v284 = vadd.f32 %v260, %v280
    %285 = vrot.lane.b32.xlu0 %v245, 64
    %v286 = vpop.permute.xlu0 %285
    %287 = vrot.lane.b32.xlu0 %v246, 64
    %v288 = vpop.permute.xlu0 %287
    %289 = vrot.lane.b32.xlu0 %v247, 64
    %v290 = vpop.permute.xlu0 %289
    %291 = vrot.lane.b32.xlu0 %v248, 64
    %v292 = vpop.permute.xlu0 %291
    %v293 = vadd.f32 %v281, %v286
    %v294 = vadd.f32 %v282, %v288
    %v295 = vadd.f32 %v283, %v290
    %v296 = vadd.f32 %v284, %v292
    %v297 = vld [vmem:[#allocation2 + $0x40] sm:$0xf]
    %v298 = vld [vmem:[#allocation2 + $0x44] sm:$0xf]
    %v299 = vld [vmem:[#allocation2 + $0x48] sm:$0xf]
    %v300 = vld [vmem:[#allocation2 + $0x4c] sm:$0xf]
    %v301 = vld [vmem:[#allocation2 + $0x50] sm:$0xf]
    %v302 = vld [vmem:[#allocation2 + $0x54] sm:$0xf]
    %v303 = vld [vmem:[#allocation2 + $0x58] sm:$0xf]
    %v304 = vld [vmem:[#allocation2 + $0x5c] sm:$0xf]
    %v305 = vld [vmem:[#allocation2 + $0x60] sm:$0xf]
    %v306 = vld [vmem:[#allocation2 + $0x64] sm:$0xf]
    %v307 = vld [vmem:[#allocation2 + $0x68] sm:$0xf]
    %v308 = vld [vmem:[#allocation2 + $0x6c] sm:$0xf]
    %v309 = vld [vmem:[#allocation2 + $0x70] sm:$0xf]
    %v310 = vld [vmem:[#allocation2 + $0x74] sm:$0xf]
    %v311 = vld [vmem:[#allocation2 + $0x78] sm:$0xf]
    %v312 = vld [vmem:[#allocation2 + $0x7c] sm:$0xf]
    %v313 = vpack.c.bf16 %v294, %v293
    %v314 = vpack.c.bf16 %v296, %v295
    %v315 = vlaneseq
    %v316 = vshrl.u32 %v315, 7
    %v317 = vsub.s32 1, %v316
    %v318 = vrot.slane %v41, %v317
    %v335 = vunpack.c.l.b16 %v297
    %v336 = vunpack.c.l.b16 %v298
    %v337 = vunpack.c.l.b16 %v299
    %v338 = vunpack.c.l.b16 %v300
    %v339 = vunpack.c.l.b16 %v301
    %v340 = vunpack.c.l.b16 %v302
    %v341 = vunpack.c.l.b16 %v303
    %v342 = vunpack.c.l.b16 %v304
    %v343 = vunpack.c.l.b16 %v305
    %v344 = vunpack.c.l.b16 %v306
    %v345 = vunpack.c.l.b16 %v307
    %v346 = vunpack.c.l.b16 %v308
    %v347 = vunpack.c.l.b16 %v309
    %v348 = vunpack.c.l.b16 %v310
    %v349 = vunpack.c.l.b16 %v311
    %v350 = vunpack.c.l.b16 %v312
    %v351 = vpack.c.b16 %v336, %v335
    %v352 = vpack.c.b16 %v338, %v337
    %v353 = vpack.c.b16 %v340, %v339
    %v354 = vpack.c.b16 %v342, %v341
    %v355 = vpack.c.b16 %v344, %v343
    %v356 = vpack.c.b16 %v346, %v345
    %v357 = vpack.c.b16 %v348, %v347
    %v358 = vpack.c.b16 %v350, %v349
    %367 = vmatprep.subr.bf16.mxu0 0
    %368 = vmatpush1.bf16.msra.mxu0 %v351
    %369 = vmatprep.subr.bf16.mxu0 0
    %370 = vmatpush1.bf16.msra.mxu0 %v352
    %371 = vmatprep.subr.bf16.mxu0 0
    %372 = vmatpush1.bf16.msra.mxu0 %v353
    %373 = vmatprep.subr.bf16.mxu0 0
    %374 = vmatpush1.bf16.msra.mxu0 %v354
    %375 = vmatprep.subr.bf16.mxu0 0
    %376 = vmatpush1.bf16.msra.mxu0 %v355
    %377 = vmatprep.subr.bf16.mxu0 0
    %378 = vmatpush1.bf16.msra.mxu0 %v356
    %379 = vmatprep.subr.bf16.mxu0 0
    %380 = vmatpush1.bf16.msra.mxu0 %v357
    %381 = vmatprep.subr.bf16.mxu0 0
    %382 = vmatpush1.bf16.msra.mxu0 %v358
    %383 = vmatprep.subr.bf16.mxu0 0
    %384 = vmatpush1.bf16.msra.mxu0 0
    %385 = vmatprep.subr.bf16.mxu0 0
    %386 = vmatpush1.bf16.msra.mxu0 0
    %387 = vmatprep.subr.bf16.mxu0 0
    %388 = vmatpush1.bf16.msra.mxu0 0
    %389 = vmatprep.subr.bf16.mxu0 0
    %390 = vmatpush1.bf16.msra.mxu0 0
    %391 = vmatprep.subr.bf16.mxu0 0
    %392 = vmatpush1.bf16.msra.mxu0 0
    %393 = vmatprep.subr.bf16.mxu0 0
    %394 = vmatpush1.bf16.msra.mxu0 0
    %395 = vmatprep.subr.bf16.mxu0 0
    %396 = vmatpush1.bf16.msra.mxu0 0
    %397 = vmatprep.subr.bf16.mxu0 0
    %398 = vmatpush1.bf16.msra.mxu0 0
    %399 = vmatprep.mubr.bf16.mxu0 0
    %400 = vmatmul.mubr.bf16.gmra.mrb[0].mxu0 %v313
    %v401 = vpop.f32.mrb[0].mxu0
    %v402 = vadd.f32 %v318, %v401
    %v403 = vpop.f32.mrb[0].mxu0
    %v404 = vpop.f32.mrb[0].mxu0
    %v405 = vadd.f32 %v318, %v404
    %v406 = vpop.f32.mrb[0].mxu0
    %407 = vmatprep.mubr.bf16.mxu0 0
    %408 = vmatmul.mubr.bf16.gmra.mrb[0].mxu0 %v314
    %v409 = vpop.f32.mrb[0].mxu0
    %v410 = vadd.f32 %v318, %v409
    %v411 = vpop.f32.mrb[0].mxu0
    %v412 = vpop.f32.mrb[0].mxu0
    %v413 = vadd.f32 %v318, %v412
    %v414 = vpop.f32.mrb[0].mxu0
    %415 = vdwg.mxu0
    %v416 = vmax.f32 %v402, 0.0
    %v417 = vmax.f32 %v405, 0.0
    %v418 = vmax.f32 %v410, 0.0
    %v419 = vmax.f32 %v413, 0.0
    %v420 = vld [vmem:[#allocation2 + $0x80] sm:$0xf]
    %v421 = vld [vmem:[#allocation2 + $0x84] sm:$0xf]
    %v422 = vld [vmem:[#allocation2 + $0x88] sm:$0xf]
    %v423 = vld [vmem:[#allocation2 + $0x8c] sm:$0xf]
    %v424 = vld [vmem:[#allocation2 + $0x90] sm:$0xf]
    %v425 = vld [vmem:[#allocation2 + $0x94] sm:$0xf]
    %v426 = vld [vmem:[#allocation2 + $0x98] sm:$0xf]
    %v427 = vld [vmem:[#allocation2 + $0x9c] sm:$0xf]
    %v428 = vld [vmem:[#allocation2 + $0xa0] sm:$0xf]
    %v429 = vld [vmem:[#allocation2 + $0xa4] sm:$0xf]
    %v430 = vld [vmem:[#allocation2 + $0xa8] sm:$0xf]
    %v431 = vld [vmem:[#allocation2 + $0xac] sm:$0xf]
    %v432 = vld [vmem:[#allocation2 + $0xb0] sm:$0xf]
    %v433 = vld [vmem:[#allocation2 + $0xb4] sm:$0xf]
    %v434 = vld [vmem:[#allocation2 + $0xb8] sm:$0xf]
    %v435 = vld [vmem:[#allocation2 + $0xbc] sm:$0xf]
    %v436 = vlaneseq
    %v437 = vshrl.u32 %v436, 7
    %v438 = vsub.s32 2, %v437
    %v439 = vrot.slane %v41, %v438
    %v444 = vunpack.c.l.b16 %v33
    %v445 = vunpack.c.l.b16 %v34
    %v446 = vunpack.c.l.b16 %v35
    %v447 = vunpack.c.l.b16 %v36
    %v448 = vpack.c.b16 %v445, %v444
    %v449 = vpack.c.b16 %v447, %v446
    %v468 = vunpack.c.l.b16 %v420
    %v469 = vunpack.c.l.b16 %v421
    %v470 = vunpack.c.l.b16 %v422
    %v471 = vunpack.c.l.b16 %v423
    %v472 = vunpack.c.l.b16 %v424
    %v473 = vunpack.c.l.b16 %v425
    %v474 = vunpack.c.l.b16 %v426
    %v475 = vunpack.c.l.b16 %v427
    %v476 = vunpack.c.l.b16 %v428
    %v477 = vunpack.c.l.b16 %v429
    %v478 = vunpack.c.l.b16 %v430
    %v479 = vunpack.c.l.b16 %v431
    %v480 = vunpack.c.l.b16 %v432
    %v481 = vunpack.c.l.b16 %v433
    %v482 = vunpack.c.l.b16 %v434
    %v483 = vunpack.c.l.b16 %v435
    %v484 = vpack.c.b16 %v469, %v468
    %v485 = vpack.c.b16 %v471, %v470
    %v486 = vpack.c.b16 %v473, %v472
    %v487 = vpack.c.b16 %v475, %v474
    %v488 = vpack.c.b16 %v477, %v476
    %v489 = vpack.c.b16 %v479, %v478
    %v490 = vpack.c.b16 %v481, %v480
    %v491 = vpack.c.b16 %v483, %v482
    %500 = vmatprep.subr.bf16.mxu0 0
    %501 = vmatpush1.bf16.msra.mxu0 %v484
    %502 = vmatprep.subr.bf16.mxu0 0
    %503 = vmatpush1.bf16.msra.mxu0 %v485
    %504 = vmatprep.subr.bf16.mxu0 0
    %505 = vmatpush1.bf16.msra.mxu0 %v486
    %506 = vmatprep.subr.bf16.mxu0 0
    %507 = vmatpush1.bf16.msra.mxu0 %v487
    %508 = vmatprep.subr.bf16.mxu0 0
    %509 = vmatpush1.bf16.msra.mxu0 %v488
    %510 = vmatprep.subr.bf16.mxu0 0
    %511 = vmatpush1.bf16.msra.mxu0 %v489
    %512 = vmatprep.subr.bf16.mxu0 0
    %513 = vmatpush1.bf16.msra.mxu0 %v490
    %514 = vmatprep.subr.bf16.mxu0 0
    %515 = vmatpush1.bf16.msra.mxu0 %v491
    %516 = vmatprep.subr.bf16.mxu0 0
    %517 = vmatpush1.bf16.msra.mxu0 0
    %518 = vmatprep.subr.bf16.mxu0 0
    %519 = vmatpush1.bf16.msra.mxu0 0
    %520 = vmatprep.subr.bf16.mxu0 0
    %521 = vmatpush1.bf16.msra.mxu0 0
    %522 = vmatprep.subr.bf16.mxu0 0
    %523 = vmatpush1.bf16.msra.mxu0 0
    %524 = vmatprep.subr.bf16.mxu0 0
    %525 = vmatpush1.bf16.msra.mxu0 0
    %526 = vmatprep.subr.bf16.mxu0 0
    %527 = vmatpush1.bf16.msra.mxu0 0
    %528 = vmatprep.subr.bf16.mxu0 0
    %529 = vmatpush1.bf16.msra.mxu0 0
    %530 = vmatprep.subr.bf16.mxu0 0
    %531 = vmatpush1.bf16.msra.mxu0 0
    %532 = vmatprep.mubr.bf16.mxu0 0
    %533 = vmatmul.mubr.bf16.gmra.mrb[0].mxu0 %v448
    %v534 = vpop.f32.mrb[0].mxu0
    %v535 = vadd.f32 %v439, %v534
    %v536 = vpop.f32.mrb[0].mxu0
    %v537 = vpop.f32.mrb[0].mxu0
    %v538 = vadd.f32 %v439, %v537
    %v539 = vpop.f32.mrb[0].mxu0
    %540 = vmatprep.mubr.bf16.mxu0 0
    %541 = vmatmul.mubr.bf16.gmra.mrb[0].mxu0 %v449
    %v542 = vpop.f32.mrb[0].mxu0
    %v543 = vadd.f32 %v439, %v542
    %v544 = vpop.f32.mrb[0].mxu0
    %v545 = vpop.f32.mrb[0].mxu0
    %v546 = vadd.f32 %v439, %v545
    %v547 = vpop.f32.mrb[0].mxu0
    %548 = vdwg.mxu0
    %v549 = vadd.f32 %v416, %v535
    %v550 = vadd.f32 %v417, %v538
    %v551 = vadd.f32 %v418, %v543
    %v552 = vadd.f32 %v419, %v546
    %v553 = vmax.f32 %v549, 0.0
    %v554 = vmax.f32 %v550, 0.0
    %v555 = vmax.f32 %v551, 0.0
    %v556 = vmax.f32 %v552, 0.0
    %v557 = vrot.slane %v553, 4
    %v558 = vrot.slane %v554, 4
    %v559 = vrot.slane %v555, 4
    %v560 = vrot.slane %v556, 4
    %vm561 = vcmp.lt.s32.totalorder %v44, 4
    %v562 = vsel %vm561, %v559, %v560
    %v563 = vsel %vm561, %v558, %v559
    %v564 = vsel %vm561, %v557, %v558
    %v565 = vsel %vm561, %v560, %v557
    %vm566 = vcmp.ge.s32.totalorder %v48, 4
    %vm567 = vcmp.ge.s32.totalorder %v49, 4
    %vm568 = vcmp.ge.s32.totalorder %v50, 4
    %vm569 = vcmp.ge.s32.totalorder %v51, 4
    %v570 = vsel %vm566, 1, 0
    %v571 = vsel %vm567, 1, 0
    %v572 = vsel %vm568, 1, 0
    %v573 = vsel %vm569, 1, 0
    %vm574 = vcmp.eq.s32.totalorder %v570, 1
    %vm575 = vcmp.eq.s32.totalorder %v571, 1
    %vm576 = vcmp.eq.s32.totalorder %v572, 1
    %vm577 = vcmp.eq.s32.totalorder %v573, 1
    %v578 = vsel %vm574, %v565, 0.0
    %v579 = vsel %vm575, %v564, 0.0
    %v580 = vsel %vm576, %v563, 0.0
    %v581 = vsel %vm577, %v562, 0.0
    %v582 = vrot.slane %v553, 6
    %v583 = vrot.slane %v554, 6
    %v584 = vrot.slane %v555, 6
    %v585 = vrot.slane %v556, 6
    %v586 = vsel %vm56, %v584, %v585
    %v587 = vsel %vm56, %v583, %v584
    %v588 = vsel %vm56, %v582, %v583
    %v589 = vsel %vm56, %v585, %v582
    %v590 = vsel %vm69, %v589, 0.0
    %v591 = vsel %vm70, %v588, 0.0
    %v592 = vsel %vm71, %v587, 0.0
    %v593 = vsel %vm72, %v586, 0.0
    %594 = vrot.lane.b32.xlu0 %v590, 32
    %v595 = vpop.permute.xlu0 %594
    %596 = vrot.lane.b32.xlu0 %v591, 32
    %v597 = vpop.permute.xlu0 %596
    %598 = vrot.lane.b32.xlu0 %v592, 32
    %v599 = vpop.permute.xlu0 %598
    %600 = vrot.lane.b32.xlu0 %v593, 32
    %v601 = vpop.permute.xlu0 %600
    %v602 = vadd.f32 %v578, %v595
    %v603 = vadd.f32 %v579, %v597
    %v604 = vadd.f32 %v580, %v599
    %v605 = vadd.f32 %v581, %v601
    %606 = vrot.lane.b32.xlu0 %v553, 64
    %v607 = vpop.permute.xlu0 %606
    %608 = vrot.lane.b32.xlu0 %v554, 64
    %v609 = vpop.permute.xlu0 %608
    %610 = vrot.lane.b32.xlu0 %v555, 64
    %v611 = vpop.permute.xlu0 %610
    %612 = vrot.lane.b32.xlu0 %v556, 64
    %v613 = vpop.permute.xlu0 %612
    %v614 = vadd.f32 %v602, %v607
    %v615 = vadd.f32 %v603, %v609
    %v616 = vadd.f32 %v604, %v611
    %v617 = vadd.f32 %v605, %v613
    %v618 = vld [vmem:[#allocation2 + $0xc0] sm:$0xf]
    %v619 = vld [vmem:[#allocation2 + $0xc4] sm:$0xf]
    %v620 = vld [vmem:[#allocation2 + $0xc8] sm:$0xf]
    %v621 = vld [vmem:[#allocation2 + $0xcc] sm:$0xf]
    %v622 = vld [vmem:[#allocation2 + $0xd0] sm:$0xf]
    %v623 = vld [vmem:[#allocation2 + $0xd4] sm:$0xf]
    %v624 = vld [vmem:[#allocation2 + $0xd8] sm:$0xf]
    %v625 = vld [vmem:[#allocation2 + $0xdc] sm:$0xf]
    %v626 = vld [vmem:[#allocation2 + $0xe0] sm:$0xf]
    %v627 = vld [vmem:[#allocation2 + $0xe4] sm:$0xf]
    %v628 = vld [vmem:[#allocation2 + $0xe8] sm:$0xf]
    %v629 = vld [vmem:[#allocation2 + $0xec] sm:$0xf]
    %v630 = vld [vmem:[#allocation2 + $0xf0] sm:$0xf]
    %v631 = vld [vmem:[#allocation2 + $0xf4] sm:$0xf]
    %v632 = vld [vmem:[#allocation2 + $0xf8] sm:$0xf]
    %v633 = vld [vmem:[#allocation2 + $0xfc] sm:$0xf]
    %v634 = vpack.c.bf16 %v615, %v614
    %v635 = vpack.c.bf16 %v617, %v616
    %v636 = vlaneseq
    %v637 = vshrl.u32 %v636, 7
    %v638 = vsub.s32 3, %v637
    %v639 = vrot.slane %v41, %v638
    %v656 = vunpack.c.l.b16 %v618
    %v657 = vunpack.c.l.b16 %v619
    %v658 = vunpack.c.l.b16 %v620
    %v659 = vunpack.c.l.b16 %v621
    %v660 = vunpack.c.l.b16 %v622
    %v661 = vunpack.c.l.b16 %v623
    %v662 = vunpack.c.l.b16 %v624
    %v663 = vunpack.c.l.b16 %v625
    %v664 = vunpack.c.l.b16 %v626
    %v665 = vunpack.c.l.b16 %v627
    %v666 = vunpack.c.l.b16 %v628
    %v667 = vunpack.c.l.b16 %v629
    %v668 = vunpack.c.l.b16 %v630
    %v669 = vunpack.c.l.b16 %v631
    %v670 = vunpack.c.l.b16 %v632
    %v671 = vunpack.c.l.b16 %v633
    %v672 = vpack.c.b16 %v657, %v656
    %v673 = vpack.c.b16 %v659, %v658
    %v674 = vpack.c.b16 %v661, %v660
    %v675 = vpack.c.b16 %v663, %v662
    %v676 = vpack.c.b16 %v665, %v664
    %v677 = vpack.c.b16 %v667, %v666
    %v678 = vpack.c.b16 %v669, %v668
    %v679 = vpack.c.b16 %v671, %v670
    %688 = vmatprep.subr.bf16.mxu0 0
    %689 = vmatpush1.bf16.msra.mxu0 %v672
    %690 = vmatprep.subr.bf16.mxu0 0
    %691 = vmatpush1.bf16.msra.mxu0 %v673
    %692 = vmatprep.subr.bf16.mxu0 0
    %693 = vmatpush1.bf16.msra.mxu0 %v674
    %694 = vmatprep.subr.bf16.mxu0 0
    %695 = vmatpush1.bf16.msra.mxu0 %v675
    %696 = vmatprep.subr.bf16.mxu0 0
    %697 = vmatpush1.bf16.msra.mxu0 %v676
    %698 = vmatprep.subr.bf16.mxu0 0
    %699 = vmatpush1.bf16.msra.mxu0 %v677
    %700 = vmatprep.subr.bf16.mxu0 0
    %701 = vmatpush1.bf16.msra.mxu0 %v678
    %702 = vmatprep.subr.bf16.mxu0 0
    %703 = vmatpush1.bf16.msra.mxu0 %v679
    %704 = vmatprep.subr.bf16.mxu0 0
    %705 = vmatpush1.bf16.msra.mxu0 0
    %706 = vmatprep.subr.bf16.mxu0 0
    %707 = vmatpush1.bf16.msra.mxu0 0
    %708 = vmatprep.subr.bf16.mxu0 0
    %709 = vmatpush1.bf16.msra.mxu0 0
    %710 = vmatprep.subr.bf16.mxu0 0
    %711 = vmatpush1.bf16.msra.mxu0 0
    %712 = vmatprep.subr.bf16.mxu0 0
    %713 = vmatpush1.bf16.msra.mxu0 0
    %714 = vmatprep.subr.bf16.mxu0 0
    %715 = vmatpush1.bf16.msra.mxu0 0
    %716 = vmatprep.subr.bf16.mxu0 0
    %717 = vmatpush1.bf16.msra.mxu0 0
    %718 = vmatprep.subr.bf16.mxu0 0
    %719 = vmatpush1.bf16.msra.mxu0 0
    %720 = vmatprep.mubr.bf16.mxu0 0
    %721 = vmatmul.mubr.bf16.gmra.mrb[0].mxu0 %v634
    %v722 = vpop.f32.mrb[0].mxu0
    %v723 = vadd.f32 %v639, %v722
    %v724 = vpop.f32.mrb[0].mxu0
    %v725 = vpop.f32.mrb[0].mxu0
    %v726 = vadd.f32 %v639, %v725
    %v727 = vpop.f32.mrb[0].mxu0
    %728 = vmatprep.mubr.bf16.mxu0 0
    %729 = vmatmul.mubr.bf16.gmra.mrb[0].mxu0 %v635
    %v730 = vpop.f32.mrb[0].mxu0
    %v731 = vadd.f32 %v639, %v730
    %v732 = vpop.f32.mrb[0].mxu0
    %v733 = vpop.f32.mrb[0].mxu0
    %v734 = vadd.f32 %v639, %v733
    %v735 = vpop.f32.mrb[0].mxu0
    %736 = vdwg.mxu0
    %v737 = vmax.f32 %v723, 0.0
    %v738 = vmax.f32 %v726, 0.0
    %v739 = vmax.f32 %v731, 0.0
    %v740 = vmax.f32 %v734, 0.0
    %v741 = vrot.slane %v737, 4
    %v742 = vrot.slane %v738, 4
    %v743 = vrot.slane %v739, 4
    %v744 = vrot.slane %v740, 4
    %v745 = vsel %vm561, %v743, %v744
    %v746 = vsel %vm561, %v742, %v743
    %v747 = vsel %vm561, %v741, %v742
    %v748 = vsel %vm561, %v744, %v741
    %v749 = vsel %vm574, %v748, 0.0
    %v750 = vsel %vm575, %v747, 0.0
    %v751 = vsel %vm576, %v746, 0.0
    %v752 = vsel %vm577, %v745, 0.0
    %v753 = vrot.slane %v737, 6
    %v754 = vrot.slane %v738, 6
    %v755 = vrot.slane %v739, 6
    %v756 = vrot.slane %v740, 6
    %v757 = vsel %vm56, %v755, %v756
    %v758 = vsel %vm56, %v754, %v755
    %v759 = vsel %vm56, %v753, %v754
    %v760 = vsel %vm56, %v756, %v753
    %v761 = vsel %vm69, %v760, 0.0
    %v762 = vsel %vm70, %v759, 0.0
    %v763 = vsel %vm71, %v758, 0.0
    %v764 = vsel %vm72, %v757, 0.0
    %765 = vrot.lane.b32.xlu0 %v761, 32
    %v766 = vpop.permute.xlu0 %765
    %767 = vrot.lane.b32.xlu0 %v762, 32
    %v768 = vpop.permute.xlu0 %767
    %769 = vrot.lane.b32.xlu0 %v763, 32
    %v770 = vpop.permute.xlu0 %769
    %771 = vrot.lane.b32.xlu0 %v764, 32
    %v772 = vpop.permute.xlu0 %771
    %v773 = vadd.f32 %v749, %v766
    %v774 = vadd.f32 %v750, %v768
    %v775 = vadd.f32 %v751, %v770
    %v776 = vadd.f32 %v752, %v772
    %777 = vrot.lane.b32.xlu0 %v737, 64
    %v778 = vpop.permute.xlu0 %777
    %779 = vrot.lane.b32.xlu0 %v738, 64
    %v780 = vpop.permute.xlu0 %779
    %781 = vrot.lane.b32.xlu0 %v739, 64
    %v782 = vpop.permute.xlu0 %781
    %783 = vrot.lane.b32.xlu0 %v740, 64
    %v784 = vpop.permute.xlu0 %783
    %v785 = vadd.f32 %v773, %v778
    %v786 = vadd.f32 %v774, %v780
    %v787 = vadd.f32 %v775, %v782
    %v788 = vadd.f32 %v776, %v784
    %v789 = vld [vmem:[#allocation2 + $0x100] sm:$0xf]
    %v790 = vld [vmem:[#allocation2 + $0x104] sm:$0xf]
    %v791 = vld [vmem:[#allocation2 + $0x108] sm:$0xf]
    %v792 = vld [vmem:[#allocation2 + $0x10c] sm:$0xf]
    %v793 = vld [vmem:[#allocation2 + $0x110] sm:$0xf]
    %v794 = vld [vmem:[#allocation2 + $0x114] sm:$0xf]
    %v795 = vld [vmem:[#allocation2 + $0x118] sm:$0xf]
    %v796 = vld [vmem:[#allocation2 + $0x11c] sm:$0xf]
    %v797 = vld [vmem:[#allocation2 + $0x120] sm:$0xf]
    %v798 = vld [vmem:[#allocation2 + $0x124] sm:$0xf]
    %v799 = vld [vmem:[#allocation2 + $0x128] sm:$0xf]
    %v800 = vld [vmem:[#allocation2 + $0x12c] sm:$0xf]
    %v801 = vld [vmem:[#allocation2 + $0x130] sm:$0xf]
    %v802 = vld [vmem:[#allocation2 + $0x134] sm:$0xf]
    %v803 = vld [vmem:[#allocation2 + $0x138] sm:$0xf]
    %v804 = vld [vmem:[#allocation2 + $0x13c] sm:$0xf]
    %v805 = vpack.c.bf16 %v786, %v785
    %v806 = vpack.c.bf16 %v788, %v787
    %v807 = vlaneseq
    %v808 = vshrl.u32 %v807, 7
    %v809 = vsub.s32 4, %v808
    %v810 = vrot.slane %v41, %v809
    %v827 = vunpack.c.l.b16 %v789
    %v828 = vunpack.c.l.b16 %v790
    %v829 = vunpack.c.l.b16 %v791
    %v830 = vunpack.c.l.b16 %v792
    %v831 = vunpack.c.l.b16 %v793
    %v832 = vunpack.c.l.b16 %v794
    %v833 = vunpack.c.l.b16 %v795
    %v834 = vunpack.c.l.b16 %v796
    %v835 = vunpack.c.l.b16 %v797
    %v836 = vunpack.c.l.b16 %v798
    %v837 = vunpack.c.l.b16 %v799
    %v838 = vunpack.c.l.b16 %v800
    %v839 = vunpack.c.l.b16 %v801
    %v840 = vunpack.c.l.b16 %v802
    %v841 = vunpack.c.l.b16 %v803
    %v842 = vunpack.c.l.b16 %v804
    %v843 = vpack.c.b16 %v828, %v827
    %v844 = vpack.c.b16 %v830, %v829
    %v845 = vpack.c.b16 %v832, %v831
    %v846 = vpack.c.b16 %v834, %v833
    %v847 = vpack.c.b16 %v836, %v835
    %v848 = vpack.c.b16 %v838, %v837
    %v849 = vpack.c.b16 %v840, %v839
    %v850 = vpack.c.b16 %v842, %v841
    %859 = vmatprep.subr.bf16.mxu0 0
    %860 = vmatpush1.bf16.msra.mxu0 %v843
    %861 = vmatprep.subr.bf16.mxu0 0
    %862 = vmatpush1.bf16.msra.mxu0 %v844
    %863 = vmatprep.subr.bf16.mxu0 0
    %864 = vmatpush1.bf16.msra.mxu0 %v845
    %865 = vmatprep.subr.bf16.mxu0 0
    %866 = vmatpush1.bf16.msra.mxu0 %v846
    %867 = vmatprep.subr.bf16.mxu0 0
    %868 = vmatpush1.bf16.msra.mxu0 %v847
    %869 = vmatprep.subr.bf16.mxu0 0
    %870 = vmatpush1.bf16.msra.mxu0 %v848
    %871 = vmatprep.subr.bf16.mxu0 0
    %872 = vmatpush1.bf16.msra.mxu0 %v849
    %873 = vmatprep.subr.bf16.mxu0 0
    %874 = vmatpush1.bf16.msra.mxu0 %v850
    %875 = vmatprep.subr.bf16.mxu0 0
    %876 = vmatpush1.bf16.msra.mxu0 0
    %877 = vmatprep.subr.bf16.mxu0 0
    %878 = vmatpush1.bf16.msra.mxu0 0
    %879 = vmatprep.subr.bf16.mxu0 0
    %880 = vmatpush1.bf16.msra.mxu0 0
    %881 = vmatprep.subr.bf16.mxu0 0
    %882 = vmatpush1.bf16.msra.mxu0 0
    %883 = vmatprep.subr.bf16.mxu0 0
    %884 = vmatpush1.bf16.msra.mxu0 0
    %885 = vmatprep.subr.bf16.mxu0 0
    %886 = vmatpush1.bf16.msra.mxu0 0
    %887 = vmatprep.subr.bf16.mxu0 0
    %888 = vmatpush1.bf16.msra.mxu0 0
    %889 = vmatprep.subr.bf16.mxu0 0
    %890 = vmatpush1.bf16.msra.mxu0 0
    %891 = vmatprep.mubr.bf16.mxu0 0
    %892 = vmatmul.mubr.bf16.gmra.mrb[0].mxu0 %v805
    %v893 = vpop.f32.mrb[0].mxu0
    %v894 = vadd.f32 %v810, %v893
    %v895 = vpop.f32.mrb[0].mxu0
    %v896 = vpop.f32.mrb[0].mxu0
    %v897 = vadd.f32 %v810, %v896
    %v898 = vpop.f32.mrb[0].mxu0
    %899 = vmatprep.mubr.bf16.mxu0 0
    %900 = vmatmul.mubr.bf16.gmra.mrb[0].mxu0 %v806
    %v901 = vpop.f32.mrb[0].mxu0
    %v902 = vadd.f32 %v810, %v901
    %v903 = vpop.f32.mrb[0].mxu0
    %v904 = vpop.f32.mrb[0].mxu0
    %v905 = vadd.f32 %v810, %v904
    %v906 = vpop.f32.mrb[0].mxu0
    %907 = vdwg.mxu0
    %v908 = vmax.f32 %v894, 0.0
    %v909 = vmax.f32 %v897, 0.0
    %v910 = vmax.f32 %v902, 0.0
    %v911 = vmax.f32 %v905, 0.0
    %v912 = vadd.f32 %v908, %v553
    %v913 = vadd.f32 %v909, %v554
    %v914 = vadd.f32 %v910, %v555
    %v915 = vadd.f32 %v911, %v556
    %v916 = vmax.f32 %v912, 0.0
    %v917 = vmax.f32 %v913, 0.0
    %v918 = vmax.f32 %v914, 0.0
    %v919 = vmax.f32 %v915, 0.0
    %vm920 = vcmp.ge.s32.totalorder %v48, 8
    %vm921 = vcmp.ge.s32.totalorder %v49, 8
    %vm922 = vcmp.ge.s32.totalorder %v50, 8
    %vm923 = vcmp.ge.s32.totalorder %v51, 8
    %v924 = vsel %vm920, 1, 0
    %v925 = vsel %vm921, 1, 0
    %v926 = vsel %vm922, 1, 0
    %v927 = vsel %vm923, 1, 0
    %vm928 = vcmp.eq.s32.totalorder %v924, 1
    %vm929 = vcmp.eq.s32.totalorder %v925, 1
    %vm930 = vcmp.eq.s32.totalorder %v926, 1
    %vm931 = vcmp.eq.s32.totalorder %v927, 1
    %v932 = vsel %vm928, %v919, 0.0
    %v933 = vsel %vm929, %v916, 0.0
    %v934 = vsel %vm930, %v917, 0.0
    %v935 = vsel %vm931, %v918, 0.0
    %v936 = vrot.slane %v916, 4
    %v937 = vrot.slane %v917, 4
    %v938 = vrot.slane %v918, 4
    %v939 = vrot.slane %v919, 4
    %v940 = vsel %vm561, %v938, %v939
    %v941 = vsel %vm561, %v937, %v938
    %v942 = vsel %vm561, %v936, %v937
    %v943 = vsel %vm561, %v939, %v936
    %v944 = vsel %vm574, %v943, 0.0
    %v945 = vsel %vm575, %v942, 0.0
    %v946 = vsel %vm576, %v941, 0.0
    %v947 = vsel %vm577, %v940, 0.0
    %948 = vrot.lane.b32.xlu0 %v944, 32
    %v949 = vpop.permute.xlu0 %948
    %950 = vrot.lane.b32.xlu0 %v945, 32
    %v951 = vpop.permute.xlu0 %950
    %952 = vrot.lane.b32.xlu0 %v946, 32
    %v953 = vpop.permute.xlu0 %952
    %954 = vrot.lane.b32.xlu0 %v947, 32
    %v955 = vpop.permute.xlu0 %954
    %v956 = vadd.f32 %v932, %v949
    %v957 = vadd.f32 %v933, %v951
    %v958 = vadd.f32 %v934, %v953
    %v959 = vadd.f32 %v935, %v955
    %960 = vrot.lane.b32.xlu0 %v916, 64
    %v961 = vpop.permute.xlu0 %960
    %962 = vrot.lane.b32.xlu0 %v917, 64
    %v963 = vpop.permute.xlu0 %962
    %964 = vrot.lane.b32.xlu0 %v918, 64
    %v965 = vpop.permute.xlu0 %964
    %966 = vrot.lane.b32.xlu0 %v919, 64
    %v967 = vpop.permute.xlu0 %966
    %v968 = vadd.f32 %v956, %v961
    %v969 = vadd.f32 %v957, %v963
    %v970 = vadd.f32 %v958, %v965
    %v971 = vadd.f32 %v959, %v967
    %v972 = vld [vmem:[#allocation2 + $0x140] sm:$0xf]
    %v973 = vld [vmem:[#allocation2 + $0x144] sm:$0xf]
    %v974 = vld [vmem:[#allocation2 + $0x148] sm:$0xf]
    %v975 = vld [vmem:[#allocation2 + $0x14c] sm:$0xf]
    %v976 = vld [vmem:[#allocation2 + $0x150] sm:$0xf]
    %v977 = vld [vmem:[#allocation2 + $0x154] sm:$0xf]
    %v978 = vld [vmem:[#allocation2 + $0x158] sm:$0xf]
    %v979 = vld [vmem:[#allocation2 + $0x15c] sm:$0xf]
    %v980 = vld [vmem:[#allocation2 + $0x160] sm:$0xf]
    %v981 = vld [vmem:[#allocation2 + $0x164] sm:$0xf]
    %v982 = vld [vmem:[#allocation2 + $0x168] sm:$0xf]
    %v983 = vld [vmem:[#allocation2 + $0x16c] sm:$0xf]
    %v984 = vld [vmem:[#allocation2 + $0x170] sm:$0xf]
    %v985 = vld [vmem:[#allocation2 + $0x174] sm:$0xf]
    %v986 = vld [vmem:[#allocation2 + $0x178] sm:$0xf]
    %v987 = vld [vmem:[#allocation2 + $0x17c] sm:$0xf]
    %v988 = vpack.c.bf16 %v969, %v968
    %v989 = vpack.c.bf16 %v971, %v970
    %v990 = vlaneseq
    %v991 = vshrl.u32 %v990, 7
    %v992 = vsub.s32 5, %v991
    %v993 = vrot.slane %v41, %v992
    %v1010 = vunpack.c.l.b16 %v972
    %v1011 = vunpack.c.l.b16 %v973
    %v1012 = vunpack.c.l.b16 %v974
    %v1013 = vunpack.c.l.b16 %v975
    %v1014 = vunpack.c.l.b16 %v976
    %v1015 = vunpack.c.l.b16 %v977
    %v1016 = vunpack.c.l.b16 %v978
    %v1017 = vunpack.c.l.b16 %v979
    %v1018 = vunpack.c.l.b16 %v980
    %v1019 = vunpack.c.l.b16 %v981
    %v1020 = vunpack.c.l.b16 %v982
    %v1021 = vunpack.c.l.b16 %v983
    %v1022 = vunpack.c.l.b16 %v984
    %v1023 = vunpack.c.l.b16 %v985
    %v1024 = vunpack.c.l.b16 %v986
    %v1025 = vunpack.c.l.b16 %v987
    %v1026 = vpack.c.b16 %v1011, %v1010
    %v1027 = vpack.c.b16 %v1013, %v1012
    %v1028 = vpack.c.b16 %v1015, %v1014
    %v1029 = vpack.c.b16 %v1017, %v1016
    %v1030 = vpack.c.b16 %v1019, %v1018
    %v1031 = vpack.c.b16 %v1021, %v1020
    %v1032 = vpack.c.b16 %v1023, %v1022
    %v1033 = vpack.c.b16 %v1025, %v1024
    %1042 = vmatprep.subr.bf16.mxu0 0
    %1043 = vmatpush1.bf16.msra.mxu0 %v1026
    %1044 = vmatprep.subr.bf16.mxu0 0
    %1045 = vmatpush1.bf16.msra.mxu0 %v1027
    %1046 = vmatprep.subr.bf16.mxu0 0
    %1047 = vmatpush1.bf16.msra.mxu0 %v1028
    %1048 = vmatprep.subr.bf16.mxu0 0
    %1049 = vmatpush1.bf16.msra.mxu0 %v1029
    %1050 = vmatprep.subr.bf16.mxu0 0
    %1051 = vmatpush1.bf16.msra.mxu0 %v1030
    %1052 = vmatprep.subr.bf16.mxu0 0
    %1053 = vmatpush1.bf16.msra.mxu0 %v1031
    %1054 = vmatprep.subr.bf16.mxu0 0
    %1055 = vmatpush1.bf16.msra.mxu0 %v1032
    %1056 = vmatprep.subr.bf16.mxu0 0
    %1057 = vmatpush1.bf16.msra.mxu0 %v1033
    %1058 = vmatprep.subr.bf16.mxu0 0
    %1059 = vmatpush1.bf16.msra.mxu0 0
    %1060 = vmatprep.subr.bf16.mxu0 0
    %1061 = vmatpush1.bf16.msra.mxu0 0
    %1062 = vmatprep.subr.bf16.mxu0 0
    %1063 = vmatpush1.bf16.msra.mxu0 0
    %1064 = vmatprep.subr.bf16.mxu0 0
    %1065 = vmatpush1.bf16.msra.mxu0 0
    %1066 = vmatprep.subr.bf16.mxu0 0
    %1067 = vmatpush1.bf16.msra.mxu0 0
    %1068 = vmatprep.subr.bf16.mxu0 0
    %1069 = vmatpush1.bf16.msra.mxu0 0
    %1070 = vmatprep.subr.bf16.mxu0 0
    %1071 = vmatpush1.bf16.msra.mxu0 0
    %1072 = vmatprep.subr.bf16.mxu0 0
    %1073 = vmatpush1.bf16.msra.mxu0 0
    %1074 = vmatprep.mubr.bf16.mxu0 0
    %1075 = vmatmul.mubr.bf16.gmra.mrb[0].mxu0 %v988
    %v1076 = vpop.f32.mrb[0].mxu0
    %v1077 = vadd.f32 %v993, %v1076
    %v1078 = vpop.f32.mrb[0].mxu0
    %v1079 = vpop.f32.mrb[0].mxu0
    %v1080 = vadd.f32 %v993, %v1079
    %v1081 = vpop.f32.mrb[0].mxu0
    %1082 = vmatprep.mubr.bf16.mxu0 0
    %1083 = vmatmul.mubr.bf16.gmra.mrb[0].mxu0 %v989
    %v1084 = vpop.f32.mrb[0].mxu0
    %v1085 = vadd.f32 %v993, %v1084
    %v1086 = vpop.f32.mrb[0].mxu0
    %v1087 = vpop.f32.mrb[0].mxu0
    %v1088 = vadd.f32 %v993, %v1087
    %v1089 = vpop.f32.mrb[0].mxu0
    %1090 = vdwg.mxu0
    %v1091 = vmax.f32 %v1077, 0.0
    %v1092 = vmax.f32 %v1080, 0.0
    %v1093 = vmax.f32 %v1085, 0.0
    %v1094 = vmax.f32 %v1088, 0.0
    %v1095 = vsel %vm928, %v1094, 0.0
    %v1096 = vsel %vm929, %v1091, 0.0
    %v1097 = vsel %vm930, %v1092, 0.0
    %v1098 = vsel %vm931, %v1093, 0.0
    %v1099 = vrot.slane %v1091, 4
    %v1100 = vrot.slane %v1092, 4
    %v1101 = vrot.slane %v1093, 4
    %v1102 = vrot.slane %v1094, 4
    %v1103 = vsel %vm561, %v1101, %v1102
    %v1104 = vsel %vm561, %v1100, %v1101
    %v1105 = vsel %vm561, %v1099, %v1100
    %v1106 = vsel %vm561, %v1102, %v1099
    %v1107 = vsel %vm574, %v1106, 0.0
    %v1108 = vsel %vm575, %v1105, 0.0
    %v1109 = vsel %vm576, %v1104, 0.0
    %v1110 = vsel %vm577, %v1103, 0.0
    %1111 = vrot.lane.b32.xlu0 %v1107, 32
    %v1112 = vpop.permute.xlu0 %1111
    %1113 = vrot.lane.b32.xlu0 %v1108, 32
    %v1114 = vpop.permute.xlu0 %1113
    %1115 = vrot.lane.b32.xlu0 %v1109, 32
    %v1116 = vpop.permute.xlu0 %1115
    %1117 = vrot.lane.b32.xlu0 %v1110, 32
    %v1118 = vpop.permute.xlu0 %1117
    %v1119 = vadd.f32 %v1095, %v1112
    %v1120 = vadd.f32 %v1096, %v1114
    %v1121 = vadd.f32 %v1097, %v1116
    %v1122 = vadd.f32 %v1098, %v1118
    %1123 = vrot.lane.b32.xlu0 %v1091, 64
    %v1124 = vpop.permute.xlu0 %1123
    %1125 = vrot.lane.b32.xlu0 %v1092, 64
    %v1126 = vpop.permute.xlu0 %1125
    %1127 = vrot.lane.b32.xlu0 %v1093, 64
    %v1128 = vpop.permute.xlu0 %1127
    %1129 = vrot.lane.b32.xlu0 %v1094, 64
    %v1130 = vpop.permute.xlu0 %1129
    %v1131 = vadd.f32 %v1119, %v1124
    %v1132 = vadd.f32 %v1120, %v1126
    %v1133 = vadd.f32 %v1121, %v1128
    %v1134 = vadd.f32 %v1122, %v1130
    %v1135 = vld [vmem:[#allocation2 + $0x180] sm:$0xf]
    %v1136 = vld [vmem:[#allocation2 + $0x184] sm:$0xf]
    %v1137 = vld [vmem:[#allocation2 + $0x188] sm:$0xf]
    %v1138 = vld [vmem:[#allocation2 + $0x18c] sm:$0xf]
    %v1139 = vld [vmem:[#allocation2 + $0x190] sm:$0xf]
    %v1140 = vld [vmem:[#allocation2 + $0x194] sm:$0xf]
    %v1141 = vld [vmem:[#allocation2 + $0x198] sm:$0xf]
    %v1142 = vld [vmem:[#allocation2 + $0x19c] sm:$0xf]
    %v1143 = vld [vmem:[#allocation2 + $0x1a0] sm:$0xf]
    %v1144 = vld [vmem:[#allocation2 + $0x1a4] sm:$0xf]
    %v1145 = vld [vmem:[#allocation2 + $0x1a8] sm:$0xf]
    %v1146 = vld [vmem:[#allocation2 + $0x1ac] sm:$0xf]
    %v1147 = vld [vmem:[#allocation2 + $0x1b0] sm:$0xf]
    %v1148 = vld [vmem:[#allocation2 + $0x1b4] sm:$0xf]
    %v1149 = vld [vmem:[#allocation2 + $0x1b8] sm:$0xf]
    %v1150 = vld [vmem:[#allocation2 + $0x1bc] sm:$0xf]
    %v1151 = vpack.c.bf16 %v1132, %v1131
    %v1152 = vpack.c.bf16 %v1134, %v1133
    %v1153 = vlaneseq
    %v1154 = vshrl.u32 %v1153, 7
    %v1155 = vsub.s32 6, %v1154
    %v1156 = vrot.slane %v41, %v1155
    %v1173 = vunpack.c.l.b16 %v1135
    %v1174 = vunpack.c.l.b16 %v1136
    %v1175 = vunpack.c.l.b16 %v1137
    %v1176 = vunpack.c.l.b16 %v1138
    %v1177 = vunpack.c.l.b16 %v1139
    %v1178 = vunpack.c.l.b16 %v1140
    %v1179 = vunpack.c.l.b16 %v1141
    %v1180 = vunpack.c.l.b16 %v1142
    %v1181 = vunpack.c.l.b16 %v1143
    %v1182 = vunpack.c.l.b16 %v1144
    %v1183 = vunpack.c.l.b16 %v1145
    %v1184 = vunpack.c.l.b16 %v1146
    %v1185 = vunpack.c.l.b16 %v1147
    %v1186 = vunpack.c.l.b16 %v1148
    %v1187 = vunpack.c.l.b16 %v1149
    %v1188 = vunpack.c.l.b16 %v1150
    %v1189 = vpack.c.b16 %v1174, %v1173
    %v1190 = vpack.c.b16 %v1176, %v1175
    %v1191 = vpack.c.b16 %v1178, %v1177
    %v1192 = vpack.c.b16 %v1180, %v1179
    %v1193 = vpack.c.b16 %v1182, %v1181
    %v1194 = vpack.c.b16 %v1184, %v1183
    %v1195 = vpack.c.b16 %v1186, %v1185
    %v1196 = vpack.c.b16 %v1188, %v1187
    %1205 = vmatprep.subr.bf16.mxu0 0
    %1206 = vmatpush1.bf16.msra.mxu0 %v1189
    %1207 = vmatprep.subr.bf16.mxu0 0
    %1208 = vmatpush1.bf16.msra.mxu0 %v1190
    %1209 = vmatprep.subr.bf16.mxu0 0
    %1210 = vmatpush1.bf16.msra.mxu0 %v1191
    %1211 = vmatprep.subr.bf16.mxu0 0
    %1212 = vmatpush1.bf16.msra.mxu0 %v1192
    %1213 = vmatprep.subr.bf16.mxu0 0
    %1214 = vmatpush1.bf16.msra.mxu0 %v1193
    %1215 = vmatprep.subr.bf16.mxu0 0
    %1216 = vmatpush1.bf16.msra.mxu0 %v1194
    %1217 = vmatprep.subr.bf16.mxu0 0
    %1218 = vmatpush1.bf16.msra.mxu0 %v1195
    %1219 = vmatprep.subr.bf16.mxu0 0
    %1220 = vmatpush1.bf16.msra.mxu0 %v1196
    %1221 = vmatprep.subr.bf16.mxu0 0
    %1222 = vmatpush1.bf16.msra.mxu0 0
    %1223 = vmatprep.subr.bf16.mxu0 0
    %1224 = vmatpush1.bf16.msra.mxu0 0
    %1225 = vmatprep.subr.bf16.mxu0 0
    %1226 = vmatpush1.bf16.msra.mxu0 0
    %1227 = vmatprep.subr.bf16.mxu0 0
    %1228 = vmatpush1.bf16.msra.mxu0 0
    %1229 = vmatprep.subr.bf16.mxu0 0
    %1230 = vmatpush1.bf16.msra.mxu0 0
    %1231 = vmatprep.subr.bf16.mxu0 0
    %1232 = vmatpush1.bf16.msra.mxu0 0
    %1233 = vmatprep.subr.bf16.mxu0 0
    %1234 = vmatpush1.bf16.msra.mxu0 0
    %1235 = vmatprep.subr.bf16.mxu0 0
    %1236 = vmatpush1.bf16.msra.mxu0 0
    %1237 = vmatprep.mubr.bf16.mxu0 0
    %1238 = vmatmul.mubr.bf16.gmra.mrb[0].mxu0 %v1151
    %v1239 = vpop.f32.mrb[0].mxu0
    %v1240 = vadd.f32 %v1156, %v1239
    %v1241 = vpop.f32.mrb[0].mxu0
    %v1242 = vpop.f32.mrb[0].mxu0
    %v1243 = vadd.f32 %v1156, %v1242
    %v1244 = vpop.f32.mrb[0].mxu0
    %1245 = vmatprep.mubr.bf16.mxu0 0
    %1246 = vmatmul.mubr.bf16.gmra.mrb[0].mxu0 %v1152
    %v1247 = vpop.f32.mrb[0].mxu0
    %v1248 = vadd.f32 %v1156, %v1247
    %v1249 = vpop.f32.mrb[0].mxu0
    %v1250 = vpop.f32.mrb[0].mxu0
    %v1251 = vadd.f32 %v1156, %v1250
    %v1252 = vpop.f32.mrb[0].mxu0
    %1253 = vdwg.mxu0
    %v1254 = vmax.f32 %v1240, 0.0
    %v1255 = vmax.f32 %v1243, 0.0
    %v1256 = vmax.f32 %v1248, 0.0
    %v1257 = vmax.f32 %v1251, 0.0
    %v1258 = vadd.f32 %v1254, %v916
    %v1259 = vadd.f32 %v1255, %v917
    %v1260 = vadd.f32 %v1256, %v918
    %v1261 = vadd.f32 %v1257, %v919
    %v1262 = vmax.f32 %v1258, 0.0
    %v1263 = vmax.f32 %v1259, 0.0
    %v1264 = vmax.f32 %v1260, 0.0
    %v1265 = vmax.f32 %v1261, 0.0
    %v1266 = vsel %vm928, %v1265, 0.0
    %v1267 = vsel %vm929, %v1262, 0.0
    %v1268 = vsel %vm930, %v1263, 0.0
    %v1269 = vsel %vm931, %v1264, 0.0
    %1270 = vrot.lane.b32.xlu0 %v1266, 32
    %v1271 = vpop.permute.xlu0 %1270
    %1272 = vrot.lane.b32.xlu0 %v1267, 32
    %v1273 = vpop.permute.xlu0 %1272
    %1274 = vrot.lane.b32.xlu0 %v1268, 32
    %v1275 = vpop.permute.xlu0 %1274
    %1276 = vrot.lane.b32.xlu0 %v1269, 32
    %v1277 = vpop.permute.xlu0 %1276
    %v1278 = vadd.f32 %v1271, 0.0
    %v1279 = vadd.f32 %v1273, 0.0
    %v1280 = vadd.f32 %v1275, 0.0
    %v1281 = vadd.f32 %v1277, 0.0
    %1282 = vrot.lane.b32.xlu0 %v1262, 64
    %v1283 = vpop.permute.xlu0 %1282
    %1284 = vrot.lane.b32.xlu0 %v1263, 64
    %v1285 = vpop.permute.xlu0 %1284
    %1286 = vrot.lane.b32.xlu0 %v1264, 64
    %v1287 = vpop.permute.xlu0 %1286
    %1288 = vrot.lane.b32.xlu0 %v1265, 64
    %v1289 = vpop.permute.xlu0 %1288
    %v1290 = vadd.f32 %v1278, %v1283
    %v1291 = vadd.f32 %v1279, %v1285
    %v1292 = vadd.f32 %v1280, %v1287
    %v1293 = vadd.f32 %v1281, %v1289
    %v1294 = vld [vmem:[#allocation2 + $0x1c0] sm:$0xf]
    %v1295 = vld [vmem:[#allocation2 + $0x1c4] sm:$0xf]
    %v1296 = vld [vmem:[#allocation2 + $0x1c8] sm:$0xf]
    %v1297 = vld [vmem:[#allocation2 + $0x1cc] sm:$0xf]
    %v1298 = vld [vmem:[#allocation2 + $0x1d0] sm:$0xf]
    %v1299 = vld [vmem:[#allocation2 + $0x1d4] sm:$0xf]
    %v1300 = vld [vmem:[#allocation2 + $0x1d8] sm:$0xf]
    %v1301 = vld [vmem:[#allocation2 + $0x1dc] sm:$0xf]
    %v1302 = vld [vmem:[#allocation2 + $0x1e0] sm:$0xf]
    %v1303 = vld [vmem:[#allocation2 + $0x1e4] sm:$0xf]
    %v1304 = vld [vmem:[#allocation2 + $0x1e8] sm:$0xf]
    %v1305 = vld [vmem:[#allocation2 + $0x1ec] sm:$0xf]
    %v1306 = vld [vmem:[#allocation2 + $0x1f0] sm:$0xf]
    %v1307 = vld [vmem:[#allocation2 + $0x1f4] sm:$0xf]
    %v1308 = vld [vmem:[#allocation2 + $0x1f8] sm:$0xf]
    %v1309 = vld [vmem:[#allocation2 + $0x1fc] sm:$0xf]
    %v1310 = vpack.c.bf16 %v1291, %v1290
    %v1311 = vpack.c.bf16 %v1293, %v1292
    %v1312 = vlaneseq
    %v1313 = vshrl.u32 %v1312, 7
    %v1314 = vsub.s32 7, %v1313
    %v1315 = vrot.slane %v41, %v1314
    %v1332 = vunpack.c.l.b16 %v1294
    %v1333 = vunpack.c.l.b16 %v1295
    %v1334 = vunpack.c.l.b16 %v1296
    %v1335 = vunpack.c.l.b16 %v1297
    %v1336 = vunpack.c.l.b16 %v1298
    %v1337 = vunpack.c.l.b16 %v1299
    %v1338 = vunpack.c.l.b16 %v1300
    %v1339 = vunpack.c.l.b16 %v1301
    %v1340 = vunpack.c.l.b16 %v1302
    %v1341 = vunpack.c.l.b16 %v1303
    %v1342 = vunpack.c.l.b16 %v1304
    %v1343 = vunpack.c.l.b16 %v1305
    %v1344 = vunpack.c.l.b16 %v1306
    %v1345 = vunpack.c.l.b16 %v1307
    %v1346 = vunpack.c.l.b16 %v1308
    %v1347 = vunpack.c.l.b16 %v1309
    %v1348 = vpack.c.b16 %v1333, %v1332
    %v1349 = vpack.c.b16 %v1335, %v1334
    %v1350 = vpack.c.b16 %v1337, %v1336
    %v1351 = vpack.c.b16 %v1339, %v1338
    %v1352 = vpack.c.b16 %v1341, %v1340
    %v1353 = vpack.c.b16 %v1343, %v1342
    %v1354 = vpack.c.b16 %v1345, %v1344
    %v1355 = vpack.c.b16 %v1347, %v1346
    %1364 = vmatprep.subr.bf16.mxu0 0
    %1365 = vmatpush1.bf16.msra.mxu0 %v1348
    %1366 = vmatprep.subr.bf16.mxu0 0
    %1367 = vmatpush1.bf16.msra.mxu0 %v1349
    %1368 = vmatprep.subr.bf16.mxu0 0
    %1369 = vmatpush1.bf16.msra.mxu0 %v1350
    %1370 = vmatprep.subr.bf16.mxu0 0
    %1371 = vmatpush1.bf16.msra.mxu0 %v1351
    %1372 = vmatprep.subr.bf16.mxu0 0
    %1373 = vmatpush1.bf16.msra.mxu0 %v1352
    %1374 = vmatprep.subr.bf16.mxu0 0
    %1375 = vmatpush1.bf16.msra.mxu0 %v1353
    %1376 = vmatprep.subr.bf16.mxu0 0
    %1377 = vmatpush1.bf16.msra.mxu0 %v1354
    %1378 = vmatprep.subr.bf16.mxu0 0
    %1379 = vmatpush1.bf16.msra.mxu0 %v1355
    %1380 = vmatprep.subr.bf16.mxu0 0
    %1381 = vmatpush1.bf16.msra.mxu0 0
    %1382 = vmatprep.subr.bf16.mxu0 0
    %1383 = vmatpush1.bf16.msra.mxu0 0
    %1384 = vmatprep.subr.bf16.mxu0 0
    %1385 = vmatpush1.bf16.msra.mxu0 0
    %1386 = vmatprep.subr.bf16.mxu0 0
    %1387 = vmatpush1.bf16.msra.mxu0 0
    %1388 = vmatprep.subr.bf16.mxu0 0
    %1389 = vmatpush1.bf16.msra.mxu0 0
    %1390 = vmatprep.subr.bf16.mxu0 0
    %1391 = vmatpush1.bf16.msra.mxu0 0
    %1392 = vmatprep.subr.bf16.mxu0 0
    %1393 = vmatpush1.bf16.msra.mxu0 0
    %1394 = vmatprep.subr.bf16.mxu0 0
    %1395 = vmatpush1.bf16.msra.mxu0 0
    %1396 = vmatprep.mubr.bf16.mxu0 0
    %1397 = vmatmul.mubr.bf16.gmra.mrb[0].mxu0 %v1310
    %v1398 = vpop.f32.mrb[0].mxu0
    %v1399 = vadd.f32 %v1315, %v1398
    %v1400 = vpop.f32.mrb[0].mxu0
    %v1401 = vpop.f32.mrb[0].mxu0
    %v1402 = vadd.f32 %v1315, %v1401
    %v1403 = vpop.f32.mrb[0].mxu0
    %1404 = vmatprep.mubr.bf16.mxu0 0
    %1405 = vmatmul.mubr.bf16.gmra.mrb[0].mxu0 %v1311
    %v1406 = vpop.f32.mrb[0].mxu0
    %v1407 = vadd.f32 %v1315, %v1406
    %v1408 = vpop.f32.mrb[0].mxu0
    %v1409 = vpop.f32.mrb[0].mxu0
    %v1410 = vadd.f32 %v1315, %v1409
    %v1411 = vpop.f32.mrb[0].mxu0
    %1412 = vdwg.mxu0
    %v1413 = vmax.f32 %v1399, 0.0
    %v1414 = vmax.f32 %v1402, 0.0
    %v1415 = vmax.f32 %v1407, 0.0
    %v1416 = vmax.f32 %v1410, 0.0
    %v1417 = vsel %vm928, %v1416, 0.0
    %v1418 = vsel %vm929, %v1413, 0.0
    %v1419 = vsel %vm930, %v1414, 0.0
    %v1420 = vsel %vm931, %v1415, 0.0
    %1421 = vrot.lane.b32.xlu0 %v1417, 32
    %v1422 = vpop.permute.xlu0 %1421
    %1423 = vrot.lane.b32.xlu0 %v1418, 32
    %v1424 = vpop.permute.xlu0 %1423
    %1425 = vrot.lane.b32.xlu0 %v1419, 32
    %v1426 = vpop.permute.xlu0 %1425
    %1427 = vrot.lane.b32.xlu0 %v1420, 32
    %v1428 = vpop.permute.xlu0 %1427
    %v1429 = vadd.f32 %v1422, 0.0
    %v1430 = vadd.f32 %v1424, 0.0
    %v1431 = vadd.f32 %v1426, 0.0
    %v1432 = vadd.f32 %v1428, 0.0
    %1433 = vrot.lane.b32.xlu0 %v1413, 64
    %v1434 = vpop.permute.xlu0 %1433
    %1435 = vrot.lane.b32.xlu0 %v1414, 64
    %v1436 = vpop.permute.xlu0 %1435
    %1437 = vrot.lane.b32.xlu0 %v1415, 64
    %v1438 = vpop.permute.xlu0 %1437
    %1439 = vrot.lane.b32.xlu0 %v1416, 64
    %v1440 = vpop.permute.xlu0 %1439
    %v1441 = vadd.f32 %v1429, %v1434
    %v1442 = vadd.f32 %v1430, %v1436
    %v1443 = vadd.f32 %v1431, %v1438
    %v1444 = vadd.f32 %v1432, %v1440
    %v1445 = vld [vmem:[#allocation2 + $0x200] sm:$0xf]
    %v1446 = vld [vmem:[#allocation2 + $0x204] sm:$0xf]
    %v1447 = vld [vmem:[#allocation2 + $0x208] sm:$0xf]
    %v1448 = vld [vmem:[#allocation2 + $0x20c] sm:$0xf]
    %v1449 = vld [vmem:[#allocation2 + $0x210] sm:$0xf]
    %v1450 = vld [vmem:[#allocation2 + $0x214] sm:$0xf]
    %v1451 = vld [vmem:[#allocation2 + $0x218] sm:$0xf]
    %v1452 = vld [vmem:[#allocation2 + $0x21c] sm:$0xf]
    %v1453 = vld [vmem:[#allocation2 + $0x220] sm:$0xf]
    %v1454 = vld [vmem:[#allocation2 + $0x224] sm:$0xf]
    %v1455 = vld [vmem:[#allocation2 + $0x228] sm:$0xf]
    %v1456 = vld [vmem:[#allocation2 + $0x22c] sm:$0xf]
    %v1457 = vld [vmem:[#allocation2 + $0x230] sm:$0xf]
    %v1458 = vld [vmem:[#allocation2 + $0x234] sm:$0xf]
    %v1459 = vld [vmem:[#allocation2 + $0x238] sm:$0xf]
    %v1460 = vld [vmem:[#allocation2 + $0x23c] sm:$0xf]
    %v1461 = vpack.c.bf16 %v1442, %v1441
    %v1462 = vpack.c.bf16 %v1444, %v1443
    %v1463 = vlaneseq
    %v1464 = vshrl.u32 %v1463, 7
    %v1465 = vsub.s32 0, %v1464
    %v1466 = vrot.slane %v42, %v1465
    %v1483 = vunpack.c.l.b16 %v1445
    %v1484 = vunpack.c.l.b16 %v1446
    %v1485 = vunpack.c.l.b16 %v1447
    %v1486 = vunpack.c.l.b16 %v1448
    %v1487 = vunpack.c.l.b16 %v1449
    %v1488 = vunpack.c.l.b16 %v1450
    %v1489 = vunpack.c.l.b16 %v1451
    %v1490 = vunpack.c.l.b16 %v1452
    %v1491 = vunpack.c.l.b16 %v1453
    %v1492 = vunpack.c.l.b16 %v1454
    %v1493 = vunpack.c.l.b16 %v1455
    %v1494 = vunpack.c.l.b16 %v1456
    %v1495 = vunpack.c.l.b16 %v1457
    %v1496 = vunpack.c.l.b16 %v1458
    %v1497 = vunpack.c.l.b16 %v1459
    %v1498 = vunpack.c.l.b16 %v1460
    %v1499 = vpack.c.b16 %v1484, %v1483
    %v1500 = vpack.c.b16 %v1486, %v1485
    %v1501 = vpack.c.b16 %v1488, %v1487
    %v1502 = vpack.c.b16 %v1490, %v1489
    %v1503 = vpack.c.b16 %v1492, %v1491
    %v1504 = vpack.c.b16 %v1494, %v1493
    %v1505 = vpack.c.b16 %v1496, %v1495
    %v1506 = vpack.c.b16 %v1498, %v1497
    %1515 = vmatprep.subr.bf16.mxu0 0
    %1516 = vmatpush1.bf16.msra.mxu0 %v1499
    %1517 = vmatprep.subr.bf16.mxu0 0
    %1518 = vmatpush1.bf16.msra.mxu0 %v1500
    %1519 = vmatprep.subr.bf16.mxu0 0
    %1520 = vmatpush1.bf16.msra.mxu0 %v1501
    %1521 = vmatprep.subr.bf16.mxu0 0
    %1522 = vmatpush1.bf16.msra.mxu0 %v1502
    %1523 = vmatprep.subr.bf16.mxu0 0
    %1524 = vmatpush1.bf16.msra.mxu0 %v1503
    %1525 = vmatprep.subr.bf16.mxu0 0
    %1526 = vmatpush1.bf16.msra.mxu0 %v1504
    %1527 = vmatprep.subr.bf16.mxu0 0
    %1528 = vmatpush1.bf16.msra.mxu0 %v1505
    %1529 = vmatprep.subr.bf16.mxu0 0
    %1530 = vmatpush1.bf16.msra.mxu0 %v1506
    %1531 = vmatprep.subr.bf16.mxu0 0
    %1532 = vmatpush1.bf16.msra.mxu0 0
    %1533 = vmatprep.subr.bf16.mxu0 0
    %1534 = vmatpush1.bf16.msra.mxu0 0
    %1535 = vmatprep.subr.bf16.mxu0 0
    %1536 = vmatpush1.bf16.msra.mxu0 0
    %1537 = vmatprep.subr.bf16.mxu0 0
    %1538 = vmatpush1.bf16.msra.mxu0 0
    %1539 = vmatprep.subr.bf16.mxu0 0
    %1540 = vmatpush1.bf16.msra.mxu0 0
    %1541 = vmatprep.subr.bf16.mxu0 0
    %1542 = vmatpush1.bf16.msra.mxu0 0
    %1543 = vmatprep.subr.bf16.mxu0 0
    %1544 = vmatpush1.bf16.msra.mxu0 0
    %1545 = vmatprep.subr.bf16.mxu0 0
    %1546 = vmatpush1.bf16.msra.mxu0 0
    %1547 = vmatprep.mubr.bf16.mxu0 0
    %1548 = vmatmul.mubr.bf16.gmra.mrb[0].mxu0 %v1461
    %v1549 = vpop.f32.mrb[0].mxu0
    %v1550 = vadd.f32 %v1466, %v1549
    %v1551 = vpop.f32.mrb[0].mxu0
    %v1552 = vpop.f32.mrb[0].mxu0
    %v1553 = vadd.f32 %v1466, %v1552
    %v1554 = vpop.f32.mrb[0].mxu0
    %1555 = vmatprep.mubr.bf16.mxu0 0
    %1556 = vmatmul.mubr.bf16.gmra.mrb[0].mxu0 %v1462
    %v1557 = vpop.f32.mrb[0].mxu0
    %v1558 = vadd.f32 %v1466, %v1557
    %v1559 = vpop.f32.mrb[0].mxu0
    %v1560 = vpop.f32.mrb[0].mxu0
    %v1561 = vadd.f32 %v1466, %v1560
    %v1562 = vpop.f32.mrb[0].mxu0
    %1563 = vdwg.mxu0
    %v1564 = vmax.f32 %v1550, 0.0
    %v1565 = vmax.f32 %v1553, 0.0
    %v1566 = vmax.f32 %v1558, 0.0
    %v1567 = vmax.f32 %v1561, 0.0
    %v1568 = vadd.f32 %v1564, %v1262
    %v1569 = vadd.f32 %v1565, %v1263
    %v1570 = vadd.f32 %v1566, %v1264
    %v1571 = vadd.f32 %v1567, %v1265
    %v1572 = vmax.f32 %v1568, 0.0
    %v1573 = vmax.f32 %v1569, 0.0
    %v1574 = vmax.f32 %v1570, 0.0
    %v1575 = vmax.f32 %v1571, 0.0
    %v1576 = vadd.f32 %v1572, %v1573
    %v1577 = vrot.slane %v1576, 4
    %v1578 = vadd.f32 %v1576, %v1577
    %v1579 = vrot.slane %v1578, 2
    %v1580 = vadd.f32 %v1578, %v1579
    %v1581 = vrot.slane %v1580, 1
    %v1582 = vadd.f32 %v1580, %v1581
    %v1583 = vrcp.pop 16.0
    %v1584 = vmul.f32 %v1582, %v1583
    %v1585 = vadd.f32 %v1574, %v1575
    %v1586 = vrot.slane %v1585, 4
    %v1587 = vadd.f32 %v1585, %v1586
    %v1588 = vrot.slane %v1587, 2
    %v1589 = vadd.f32 %v1587, %v1588
    %v1590 = vrot.slane %v1589, 1
    %v1591 = vadd.f32 %v1589, %v1590
    %v1592 = vmul.f32 %v1591, %v1583
    %vm1593 = vcmask 1040384
    %v1594 = vsel %vm1593, %v1584, %v1592
    %v1595 = vld [vmem:[#allocation2 + $0x240] sm:$0xf]
    %v1596 = vld [vmem:[#allocation2 + $0x244] sm:$0xf]
    %v1597 = vld [vmem:[#allocation2 + $0x248] sm:$0xf]
    %v1598 = vld [vmem:[#allocation2 + $0x24c] sm:$0xf]
    %v1599 = vld [vmem:[#allocation2 + $0x250] sm:$0xf]
    %v1600 = vld [vmem:[#allocation2 + $0x254] sm:$0xf]
    %v1601 = vld [vmem:[#allocation2 + $0x258] sm:$0xf]
    %v1602 = vld [vmem:[#allocation2 + $0x25c] sm:$0xf]
    %v1603 = vld [vmem:[#allocation2 + $0x260] sm:$0xf]
    %v1604 = vld [vmem:[#allocation2 + $0x264] sm:$0xf]
    %v1605 = vld [vmem:[#allocation2 + $0x268] sm:$0xf]
    %v1606 = vld [vmem:[#allocation2 + $0x26c] sm:$0xf]
    %v1607 = vld [vmem:[#allocation2 + $0x270] sm:$0xf]
    %v1608 = vld [vmem:[#allocation2 + $0x274] sm:$0xf]
    %v1609 = vld [vmem:[#allocation2 + $0x278] sm:$0xf]
    %v1610 = vld [vmem:[#allocation2 + $0x27c] sm:$0xf]
    %v1611 = vld [vmem:[%s1] sm:$0x1]
    %v1612 = vlaneseq
    %v1613 = vshrl.u32 %v1612, 7
    %v1614 = vsub.s32 1, %v1613
    %v1615 = vrot.slane %v42, %v1614
    %v1632 = vunpack.c.l.b16 %v1595
    %v1633 = vunpack.c.l.b16 %v1596
    %v1634 = vunpack.c.l.b16 %v1597
    %v1635 = vunpack.c.l.b16 %v1598
    %v1636 = vunpack.c.l.b16 %v1599
    %v1637 = vunpack.c.l.b16 %v1600
    %v1638 = vunpack.c.l.b16 %v1601
    %v1639 = vunpack.c.l.b16 %v1602
    %v1640 = vunpack.c.l.b16 %v1603
    %v1641 = vunpack.c.l.b16 %v1604
    %v1642 = vunpack.c.l.b16 %v1605
    %v1643 = vunpack.c.l.b16 %v1606
    %v1644 = vunpack.c.l.b16 %v1607
    %v1645 = vunpack.c.l.b16 %v1608
    %v1646 = vunpack.c.l.b16 %v1609
    %v1647 = vunpack.c.l.b16 %v1610
    %v1648 = vpack.c.b16 %v1633, %v1632
    %v1649 = vpack.c.b16 %v1635, %v1634
    %v1650 = vpack.c.b16 %v1637, %v1636
    %v1651 = vpack.c.b16 %v1639, %v1638
    %v1652 = vpack.c.b16 %v1641, %v1640
    %v1653 = vpack.c.b16 %v1643, %v1642
    %v1654 = vpack.c.b16 %v1645, %v1644
    %v1655 = vpack.c.b16 %v1647, %v1646
    %1664 = vmatprep.subr.bf16.mxu0 0
    %1665 = vmatpush1.bf16.msra.mxu0 %v1648
    %1666 = vmatprep.subr.bf16.mxu0 0
    %1667 = vmatpush1.bf16.msra.mxu0 %v1649
    %1668 = vmatprep.subr.bf16.mxu0 0
    %1669 = vmatpush1.bf16.msra.mxu0 %v1650
    %1670 = vmatprep.subr.bf16.mxu0 0
    %1671 = vmatpush1.bf16.msra.mxu0 %v1651
    %1672 = vmatprep.subr.bf16.mxu0 0
    %1673 = vmatpush1.bf16.msra.mxu0 %v1652
    %1674 = vmatprep.subr.bf16.mxu0 0
    %1675 = vmatpush1.bf16.msra.mxu0 %v1653
    %1676 = vmatprep.subr.bf16.mxu0 0
    %1677 = vmatpush1.bf16.msra.mxu0 %v1654
    %1678 = vmatprep.subr.bf16.mxu0 0
    %1679 = vmatpush1.bf16.msra.mxu0 %v1655
    %1680 = vmatprep.subr.bf16.mxu0 0
    %1681 = vmatpush1.bf16.msra.mxu0 0
    %1682 = vmatprep.subr.bf16.mxu0 0
    %1683 = vmatpush1.bf16.msra.mxu0 0
    %1684 = vmatprep.subr.bf16.mxu0 0
    %1685 = vmatpush1.bf16.msra.mxu0 0
    %1686 = vmatprep.subr.bf16.mxu0 0
    %1687 = vmatpush1.bf16.msra.mxu0 0
    %1688 = vmatprep.subr.bf16.mxu0 0
    %1689 = vmatpush1.bf16.msra.mxu0 0
    %1690 = vmatprep.subr.bf16.mxu0 0
    %1691 = vmatpush1.bf16.msra.mxu0 0
    %1692 = vmatprep.subr.bf16.mxu0 0
    %1693 = vmatpush1.bf16.msra.mxu0 0
    %1694 = vmatprep.subr.bf16.mxu0 0
    %1695 = vmatpush1.bf16.msra.mxu0 0
    %1696 = vmatprep.mubr.bf16.mxu0 0
    %1697 = vmatmul.mubr.bf16.gmra.mrb[0].mxu0 %v1611
    %v1698 = vpop.f32.mrb[0].mxu0
    %v1699 = vadd.f32 %v1615, %v1698
    %v1700 = vpop.f32.mrb[0].mxu0
    %v1701 = vpop.f32.mrb[0].mxu0
    %v1702 = vpop.f32.mrb[0].mxu0
    %1703 = vdwg.mxu0
    %v1704 = vmax.f32 %v1699, 0.0
    %v1705 = vpack.c.bf16 %v1594, %v1594
    %v1706 = vpack.c.bf16 %v1704, %v1704
    %v1707 = vld [vmem:[#allocation2 + $0x280] sm:$0xf]
    %v1708 = vld [vmem:[#allocation2 + $0x284] sm:$0xf]
    %v1709 = vld [vmem:[#allocation2 + $0x288] sm:$0xf]
    %v1710 = vld [vmem:[#allocation2 + $0x28c] sm:$0xf]
    %v1711 = vld [vmem:[#allocation2 + $0x290] sm:$0xf]
    %v1712 = vld [vmem:[#allocation2 + $0x294] sm:$0xf]
    %v1713 = vld [vmem:[#allocation2 + $0x298] sm:$0xf]
    %v1714 = vld [vmem:[#allocation2 + $0x29c] sm:$0xf]
    %v1715 = vld [vmem:[#allocation2 + $0x2a0] sm:$0xf]
    %v1716 = vld [vmem:[#allocation2 + $0x2a4] sm:$0xf]
    %v1717 = vld [vmem:[#allocation2 + $0x2a8] sm:$0xf]
    %v1718 = vld [vmem:[#allocation2 + $0x2ac] sm:$0xf]
    %v1719 = vld [vmem:[#allocation2 + $0x2b0] sm:$0xf]
    %v1720 = vld [vmem:[#allocation2 + $0x2b4] sm:$0xf]
    %v1721 = vld [vmem:[#allocation2 + $0x2b8] sm:$0xf]
    %v1722 = vld [vmem:[#allocation2 + $0x2bc] sm:$0xf]
    %v1723 = vld [vmem:[#allocation2 + $0x2c0] sm:$0xf]
    %v1724 = vld [vmem:[#allocation2 + $0x2c4] sm:$0xf]
    %v1725 = vld [vmem:[#allocation2 + $0x2c8] sm:$0xf]
    %v1726 = vld [vmem:[#allocation2 + $0x2cc] sm:$0xf]
    %v1727 = vld [vmem:[#allocation2 + $0x2d0] sm:$0xf]
    %v1728 = vld [vmem:[#allocation2 + $0x2d4] sm:$0xf]
    %v1729 = vld [vmem:[#allocation2 + $0x2d8] sm:$0xf]
    %v1730 = vld [vmem:[#allocation2 + $0x2dc] sm:$0xf]
    %v1731 = vld [vmem:[#allocation2 + $0x2e0] sm:$0xf]
    %v1732 = vld [vmem:[#allocation2 + $0x2e4] sm:$0xf]
    %v1733 = vld [vmem:[#allocation2 + $0x2e8] sm:$0xf]
    %v1734 = vld [vmem:[#allocation2 + $0x2ec] sm:$0xf]
    %v1735 = vld [vmem:[#allocation2 + $0x2f0] sm:$0xf]
    %v1736 = vld [vmem:[#allocation2 + $0x2f4] sm:$0xf]
    %v1737 = vld [vmem:[#allocation2 + $0x2f8] sm:$0xf]
    %v1738 = vld [vmem:[#allocation2 + $0x2fc] sm:$0xf]
    %v1739 = vlaneseq
    %v1740 = vshrl.u32 %v1739, 7
    %v1741 = vsub.s32 2, %v1740
    %v1742 = vrot.slane %v42, %v1741
    %v1775 = vunpack.c.l.b16 %v1707
    %v1776 = vunpack.c.l.b16 %v1708
    %v1777 = vunpack.c.l.b16 %v1709
    %v1778 = vunpack.c.l.b16 %v1710
    %v1779 = vunpack.c.l.b16 %v1711
    %v1780 = vunpack.c.l.b16 %v1712
    %v1781 = vunpack.c.l.b16 %v1713
    %v1782 = vunpack.c.l.b16 %v1714
    %v1783 = vunpack.c.l.b16 %v1715
    %v1784 = vunpack.c.l.b16 %v1716
    %v1785 = vunpack.c.l.b16 %v1717
    %v1786 = vunpack.c.l.b16 %v1718
    %v1787 = vunpack.c.l.b16 %v1719
    %v1788 = vunpack.c.l.b16 %v1720
    %v1789 = vunpack.c.l.b16 %v1721
    %v1790 = vunpack.c.l.b16 %v1722
    %v1791 = vunpack.c.l.b16 %v1723
    %v1792 = vunpack.c.l.b16 %v1724
    %v1793 = vunpack.c.l.b16 %v1725
    %v1794 = vunpack.c.l.b16 %v1726
    %v1795 = vunpack.c.l.b16 %v1727
    %v1796 = vunpack.c.l.b16 %v1728
    %v1797 = vunpack.c.l.b16 %v1729
    %v1798 = vunpack.c.l.b16 %v1730
    %v1799 = vunpack.c.l.b16 %v1731
    %v1800 = vunpack.c.l.b16 %v1732
    %v1801 = vunpack.c.l.b16 %v1733
    %v1802 = vunpack.c.l.b16 %v1734
    %v1803 = vunpack.c.l.b16 %v1735
    %v1804 = vunpack.c.l.b16 %v1736
    %v1805 = vunpack.c.l.b16 %v1737
    %v1806 = vunpack.c.l.b16 %v1738
    %v1807 = vpack.c.b16 %v1776, %v1775
    %v1808 = vpack.c.b16 %v1778, %v1777
    %v1809 = vpack.c.b16 %v1780, %v1779
    %v1810 = vpack.c.b16 %v1782, %v1781
    %v1811 = vpack.c.b16 %v1784, %v1783
    %v1812 = vpack.c.b16 %v1786, %v1785
    %v1813 = vpack.c.b16 %v1788, %v1787
    %v1814 = vpack.c.b16 %v1790, %v1789
    %v1815 = vpack.c.b16 %v1792, %v1791
    %v1816 = vpack.c.b16 %v1794, %v1793
    %v1817 = vpack.c.b16 %v1796, %v1795
    %v1818 = vpack.c.b16 %v1798, %v1797
    %v1819 = vpack.c.b16 %v1800, %v1799
    %v1820 = vpack.c.b16 %v1802, %v1801
    %v1821 = vpack.c.b16 %v1804, %v1803
    %v1822 = vpack.c.b16 %v1806, %v1805
    %1839 = vmatprep.subr.bf16.mxu0 0
    %1840 = vmatpush1.bf16.msra.mxu0 %v1807
    %1841 = vmatprep.subr.bf16.mxu0 0
    %1842 = vmatpush1.bf16.msra.mxu0 %v1808
    %1843 = vmatprep.subr.bf16.mxu0 0
    %1844 = vmatpush1.bf16.msra.mxu0 %v1809
    %1845 = vmatprep.subr.bf16.mxu0 0
    %1846 = vmatpush1.bf16.msra.mxu0 %v1810
    %1847 = vmatprep.subr.bf16.mxu0 0
    %1848 = vmatpush1.bf16.msra.mxu0 %v1811
    %1849 = vmatprep.subr.bf16.mxu0 0
    %1850 = vmatpush1.bf16.msra.mxu0 %v1812
    %1851 = vmatprep.subr.bf16.mxu0 0
    %1852 = vmatpush1.bf16.msra.mxu0 %v1813
    %1853 = vmatprep.subr.bf16.mxu0 0
    %1854 = vmatpush1.bf16.msra.mxu0 %v1814
    %1855 = vmatprep.subr.bf16.mxu0 0
    %1856 = vmatpush1.bf16.msra.mxu0 %v1815
    %1857 = vmatprep.subr.bf16.mxu0 0
    %1858 = vmatpush1.bf16.msra.mxu0 %v1816
    %1859 = vmatprep.subr.bf16.mxu0 0
    %1860 = vmatpush1.bf16.msra.mxu0 %v1817
    %1861 = vmatprep.subr.bf16.mxu0 0
    %1862 = vmatpush1.bf16.msra.mxu0 %v1818
    %1863 = vmatprep.subr.bf16.mxu0 0
    %1864 = vmatpush1.bf16.msra.mxu0 %v1819
    %1865 = vmatprep.subr.bf16.mxu0 0
    %1866 = vmatpush1.bf16.msra.mxu0 %v1820
    %1867 = vmatprep.subr.bf16.mxu0 0
    %1868 = vmatpush1.bf16.msra.mxu0 %v1821
    %1869 = vmatprep.subr.bf16.mxu0 0
    %1870 = vmatpush1.bf16.msra.mxu0 %v1822
    %1871 = vmatprep.mubr.bf16.mxu0 %v1706
    %1872 = vmatmul.mubr.bf16.gmra.mrb[0].mxu0 %v1705
    %v1873 = vpop.f32.mrb[0].mxu0
    %v1874 = vadd.f32 %v1742, %v1873
    %v1875 = vpop.f32.mrb[0].mxu0
    %v1876 = vpop.f32.mrb[0].mxu0
    %v1877 = vpop.f32.mrb[0].mxu0
    %1878 = vdwg.mxu0
    %v1879 = vmax.f32 %v1874, 0.0
    %v1880 = vld [vmem:[#allocation2 + $0x300] sm:$0xf]
    %v1881 = vld [vmem:[#allocation2 + $0x304] sm:$0xf]
    %v1882 = vld [vmem:[#allocation2 + $0x308] sm:$0xf]
    %v1883 = vld [vmem:[#allocation2 + $0x30c] sm:$0xf]
    %v1884 = vld [vmem:[#allocation2 + $0x310] sm:$0xf]
    %v1885 = vld [vmem:[#allocation2 + $0x314] sm:$0xf]
    %v1886 = vld [vmem:[#allocation2 + $0x318] sm:$0xf]
    %v1887 = vld [vmem:[#allocation2 + $0x31c] sm:$0xf]
    %v1888 = vld [vmem:[#allocation2 + $0x320] sm:$0xf]
    %v1889 = vld [vmem:[#allocation2 + $0x324] sm:$0xf]
    %v1890 = vld [vmem:[#allocation2 + $0x328] sm:$0xf]
    %v1891 = vld [vmem:[#allocation2 + $0x32c] sm:$0xf]
    %v1892 = vld [vmem:[#allocation2 + $0x330] sm:$0xf]
    %v1893 = vld [vmem:[#allocation2 + $0x334] sm:$0xf]
    %v1894 = vld [vmem:[#allocation2 + $0x338] sm:$0xf]
    %v1895 = vld [vmem:[#allocation2 + $0x33c] sm:$0xf]
    %v1896 = vpack.c.bf16 %v1879, %v1879
    %v1897 = vlaneseq
    %v1898 = vshrl.u32 %v1897, 7
    %v1899 = vsub.s32 3, %v1898
    %v1900 = vrot.slane %v42, %v1899
    %v1917 = vunpack.c.l.b16 %v1880
    %v1918 = vunpack.c.l.b16 %v1881
    %v1919 = vunpack.c.l.b16 %v1882
    %v1920 = vunpack.c.l.b16 %v1883
    %v1921 = vunpack.c.l.b16 %v1884
    %v1922 = vunpack.c.l.b16 %v1885
    %v1923 = vunpack.c.l.b16 %v1886
    %v1924 = vunpack.c.l.b16 %v1887
    %v1925 = vunpack.c.l.b16 %v1888
    %v1926 = vunpack.c.l.b16 %v1889
    %v1927 = vunpack.c.l.b16 %v1890
    %v1928 = vunpack.c.l.b16 %v1891
    %v1929 = vunpack.c.l.b16 %v1892
    %v1930 = vunpack.c.l.b16 %v1893
    %v1931 = vunpack.c.l.b16 %v1894
    %v1932 = vunpack.c.l.b16 %v1895
    %v1933 = vpack.c.b16 %v1918, %v1917
    %v1934 = vpack.c.b16 %v1920, %v1919
    %v1935 = vpack.c.b16 %v1922, %v1921
    %v1936 = vpack.c.b16 %v1924, %v1923
    %v1937 = vpack.c.b16 %v1926, %v1925
    %v1938 = vpack.c.b16 %v1928, %v1927
    %v1939 = vpack.c.b16 %v1930, %v1929
    %v1940 = vpack.c.b16 %v1932, %v1931
    %1949 = vmatprep.subr.bf16.mxu0 0
    %1950 = vmatpush1.bf16.msra.mxu0 %v1933
    %1951 = vmatprep.subr.bf16.mxu0 0
    %1952 = vmatpush1.bf16.msra.mxu0 %v1934
    %1953 = vmatprep.subr.bf16.mxu0 0
    %1954 = vmatpush1.bf16.msra.mxu0 %v1935
    %1955 = vmatprep.subr.bf16.mxu0 0
    %1956 = vmatpush1.bf16.msra.mxu0 %v1936
    %1957 = vmatprep.subr.bf16.mxu0 0
    %1958 = vmatpush1.bf16.msra.mxu0 %v1937
    %1959 = vmatprep.subr.bf16.mxu0 0
    %1960 = vmatpush1.bf16.msra.mxu0 %v1938
    %1961 = vmatprep.subr.bf16.mxu0 0
    %1962 = vmatpush1.bf16.msra.mxu0 %v1939
    %1963 = vmatprep.subr.bf16.mxu0 0
    %1964 = vmatpush1.bf16.msra.mxu0 %v1940
    %1965 = vmatprep.subr.bf16.mxu0 0
    %1966 = vmatpush1.bf16.msra.mxu0 0
    %1967 = vmatprep.subr.bf16.mxu0 0
    %1968 = vmatpush1.bf16.msra.mxu0 0
    %1969 = vmatprep.subr.bf16.mxu0 0
    %1970 = vmatpush1.bf16.msra.mxu0 0
    %1971 = vmatprep.subr.bf16.mxu0 0
    %1972 = vmatpush1.bf16.msra.mxu0 0
    %1973 = vmatprep.subr.bf16.mxu0 0
    %1974 = vmatpush1.bf16.msra.mxu0 0
    %1975 = vmatprep.subr.bf16.mxu0 0
    %1976 = vmatpush1.bf16.msra.mxu0 0
    %1977 = vmatprep.subr.bf16.mxu0 0
    %1978 = vmatpush1.bf16.msra.mxu0 0
    %1979 = vmatprep.subr.bf16.mxu0 0
    %1980 = vmatpush1.bf16.msra.mxu0 0
    %1981 = vmatprep.mubr.bf16.mxu0 0
    %1982 = vmatmul.mubr.bf16.gmra.mrb[0].mxu0 %v1896
    %v1983 = vpop.f32.mrb[0].mxu0
    %v1984 = vadd.f32 %v1900, %v1983
    %v1985 = vpop.f32.mrb[0].mxu0
    %v1986 = vpop.f32.mrb[0].mxu0
    %v1987 = vpop.f32.mrb[0].mxu0
    %1988 = vdwg.mxu0
    %1989 = vst [vmem:[#allocation5] sm:$0x3] %v1984
    // Predicated region
    $region22: #{_lambda_.1} parent=1 // pred_check
      _
    $region23: #{_lambda_.1} parent=1 // pred_check_branch
      %1991 = sbr.rel (0) target = $region25
    $region24: #{_lambda_.1} parent=1 // pred_region
      %s1993 = ssub.s32 32, 32
      %1994 = vsyncadd [#allocation4], %s1993
      %s1996 = sshll.u32 [#allocation5], 4
      %s1997 = int_to_ptr.vmem [resolvable:$true] %s1996
      %1999 = dma.vmem_to_hbm [thread:$0]  %s1997, 32, %s4, [#allocation4]
    $region25: #{_lambda_.1} parent=1 // pred_fallthru
      _
    // Predicated region
    $region26: #{_lambda_.1} parent=1 // pred_check
      _
    $region27: #{_lambda_.1} parent=1 // pred_check_branch
      %2001 = sbr.rel (0) target = $region29
    $region28: #{_lambda_.1} parent=1 // pred_region
      %2002 = dma.done [#allocation4], 32
    $region29: #{_lambda_.1} parent=1 // pred_fallthru
      _
    %2003 = vsyncpa [#allocation3], 1
    %2004 = vsyncpa [#allocation4], 1

</llo_original>
